<compile_context>
chip_gen: v5e
topology: v5e:2x2
jax: 0.10.0
libtpu: 0.0.40
codegen_flags: <defaults>
</compile_context>

<pallas_src>
import numpy as np

import jax
import jax.numpy as jnp
from jax.experimental import pallas as pl
from jax.experimental.pallas import tpu as pltpu


# ----------------------------------------------------------------------------
# Config helpers (mirror make_resample_kernel / UpFirDnSmooth.__init__)
# ----------------------------------------------------------------------------

def make_resample_kernel(k):
    """2D resampling kernel from a 1D magnitude list (matches the PyTorch helper)."""
    k = np.asarray(k, dtype=np.float32)
    if k.ndim == 1:
        k = np.outer(k, k)
    k = k / k.sum()
    return k


def upfirdn_smooth_config(resample_kernel, upsample_factor, downsample_factor, kernel_size):
    """Returns (normalized 1D kernel, gain, (pad0, pad1)) mirroring UpFirDnSmooth.__init__.

    The 2D kernel used by the module is outer(k1n, k1n) * gain (separable by construction).
    """
    k1 = np.asarray(resample_kernel, dtype=np.float32)
    assert k1.ndim == 1, "resample_kernel must be a 1D magnitude list"
    k1 = k1 / k1.sum()  # outer(k, k) / outer(k, k).sum() == outer(k/sum, k/sum)
    ksz = k1.shape[0]
    if upsample_factor > 1:
        gain = float(upsample_factor ** 2)
        pad = ksz - upsample_factor - (kernel_size - 1)
        pads = ((pad + 1) // 2 + upsample_factor - 1, pad // 2 + 1)
    elif downsample_factor > 1:
        gain = 1.0
        pad = ksz - downsample_factor + (kernel_size - 1)
        pads = ((pad - 1) // 2, pad // 2)
    else:
        raise NotImplementedError
    return k1, gain, pads


# ----------------------------------------------------------------------------
# Pallas kernel
# ----------------------------------------------------------------------------

def _make_fir_kernel(h, w, h_out, w_out, hp, wp, pad0, pad1, kw_taps, kh_taps):
    """Separable FIR on an NHWC block.  Taps are compile-time Python floats."""
    f32 = jnp.float32

    def kernel(x_ref, o_ref, xpad_ref, tmp_ref):
        ct = xpad_ref.shape[-1]

        # --- build the zero halo in VMEM: zero ONLY the halo strips ---
        if pad0 > 0:
            xpad_ref[:pad0, :, :] = jnp.zeros((pad0, wp, ct), f32)      # top rows
            xpad_ref[:, :pad0, :] = jnp.zeros((hp, pad0, ct), f32)      # left cols
        if pad1 > 0:
            xpad_ref[pad0 + h:, :, :] = jnp.zeros((pad1, wp, ct), f32)  # bottom rows
            xpad_ref[:, pad0 + w:, :] = jnp.zeros((hp, pad1, ct), f32)  # right cols
        xpad_ref[pad0:pad0 + h, pad0:pad0 + w, :] = x_ref[0].astype(f32)

        # --- separable W-pass (channels on lanes -> shifts are sublane-only, no XLU rotates) ---
        acc = None
        for dx, coef in kw_taps:
            term = coef * xpad_ref[:, dx:dx + w_out, :]
            acc = term if acc is None else acc + term
        tmp_ref[...] = acc

        # --- separable H-pass (shifts along the outer dim: pure addressing) ---
        acc = None
        for dy, coef in kh_taps:
            term = coef * tmp_ref[dy:dy + h_out, :, :]
            acc = term if acc is None else acc + term
        o_ref[0] = acc.astype(o_ref.dtype)

    return kernel


# ----------------------------------------------------------------------------
# Tiling / VMEM budgeting
# ----------------------------------------------------------------------------

def _vmem_capacity_bytes():
    try:
        cap = getattr(pltpu.get_tpu_info(), "vmem_capacity_bytes", None)
        if cap:
            return int(cap)
    except Exception:
        pass
    return 64 * 1024 * 1024  # conservative default (v7x per-TC physical VMEM)


def _pick_c_tile(c, per_chan_bytes, budget_bytes):
    """cdiv-friendly channel tile: full c if it fits, else a multiple of 128 (lane-dense)."""
    if c * per_chan_bytes <= budget_bytes:
        return c
    if c > 128 and 128 * per_chan_bytes <= budget_bytes:
        n = min(budget_bytes // (128 * per_chan_bytes), c // 128)
        return 128 * max(1, int(n))
    # TODO(synk): if even a 128-channel block exceeds the budget (very large H*W), add spatial
    # (H) tiling with a (kh-1)-row halo and/or run the 1-D passes as Toeplitz matmuls on the MXU.
    return c


# ----------------------------------------------------------------------------
# Forward wrappers
# ----------------------------------------------------------------------------

def upfirdn_smooth_forward_nhwc(x_nhwc, resample_kernel=(1, 3, 3, 1), upsample_factor=1,
                                downsample_factor=2, kernel_size=3):
    """Pallas forward of UpFirDnSmooth for NHWC float input (native kernel layout)."""
    k1, gain, (pad0, pad1) = upfirdn_smooth_config(
        resample_kernel, upsample_factor, downsample_factor, kernel_size)
    # TODO(synk): negative pads (the crop path of upfirdn2d) are not implemented.
    assert pad0 >= 0 and pad1 >= 0, "negative pads (crop path) not supported"

    b, h, w, c = x_nhwc.shape
    ksz = k1.shape[0]
    hp, wp = h + pad0 + pad1, w + pad0 + pad1
    h_out, w_out = hp - ksz + 1, wp - ksz + 1

    # upfirdn2d convolves with the flipped kernel == correlation with k[::-1]; fold the
    # upsample gain into the H taps so it is applied exactly once.
    kf = k1[::-1]
    kw_taps = [(i, float(kf[i])) for i in range(ksz) if kf[i] != 0.0]
    kh_taps = [(i, float(kf[i] * gain)) for i in range(ksz) if kf[i] != 0.0]

    # Per-channel working set: double-buffered in/out blocks + f32 halo & W-pass scratch.
    isz = x_nhwc.dtype.itemsize
    per_chan = (2 * isz * h * w
                + 2 * isz * h_out * w_out
                + 4 * hp * wp
                + 4 * hp * w_out)
    vmem_limit = min(_vmem_capacity_bytes() // 2, 64 * 1024 * 1024)   # 64 MiB v5e/v6e, 32 MiB v7x
    budget = (vmem_limit * 2) // 5                                    # ~40% of the scoped limit
    c_tile = _pick_c_tile(c, per_chan, budget)
    n_ct = pl.cdiv(c, c_tile)

    kernel = _make_fir_kernel(h, w, h_out, w_out, hp, wp, pad0, pad1, kw_taps, kh_taps)

    cost = pl.CostEstimate(
        flops=2 * b * c * (hp * w_out * len(kw_taps) + h_out * w_out * len(kh_taps)),
        transcendentals=0,
        bytes_accessed=isz * b * c * (h * w + h_out * w_out),
    )

    return pl.pallas_call(
        kernel,
        out_shape=jax.ShapeDtypeStruct((b, h_out, w_out, c), x_nhwc.dtype),
        grid_spec=pltpu.PrefetchScalarGridSpec(
            num_scalar_prefetch=0,
            grid=(b, n_ct),
            in_specs=[pl.BlockSpec((1, h, w, c_tile), lambda bi, ci: (bi, 0, 0, ci))],
            out_specs=pl.BlockSpec((1, h_out, w_out, c_tile), lambda bi, ci: (bi, 0, 0, ci)),
            scratch_shapes=[pltpu.VMEM((hp, wp, c_tile), jnp.float32),
                            pltpu.VMEM((hp, w_out, c_tile), jnp.float32)],
        ),
        compiler_params=pltpu.CompilerParams(
            dimension_semantics=("parallel", "parallel"),
            vmem_limit_bytes=vmem_limit),
        cost_estimate=cost,
    )(x_nhwc)


def upfirdn_smooth_forward(x_nchw, resample_kernel=(1, 3, 3, 1), upsample_factor=1,
                           downsample_factor=2, kernel_size=3):
    """NCHW wrapper matching the PyTorch module.  The boundary transposes are layout plumbing;
    call upfirdn_smooth_forward_nhwc directly from an NHWC model to avoid them."""
    x_nhwc = jnp.transpose(x_nchw, (0, 2, 3, 1))
    out = upfirdn_smooth_forward_nhwc(x_nhwc, resample_kernel, upsample_factor,
                                      downsample_factor, kernel_size)
    return jnp.transpose(out, (0, 3, 1, 2))


# ----------------------------------------------------------------------------
# Pure-JAX reference (mirrors upfirdn2d(x, k, up=1, down=1, pad=pad))
# ----------------------------------------------------------------------------

def reference_forward(x, resample_kernel=(1, 3, 3, 1), upsample_factor=1,
                      downsample_factor=2, kernel_size=3):
    _, gain, (pad0, pad1) = upfirdn_smooth_config(
        resample_kernel, upsample_factor, downsample_factor, kernel_size)
    k2d = make_resample_kernel(resample_kernel) * gain
    b, c, h, w = x.shape
    xp = jnp.pad(x, ((0, 0), (0, 0), (pad0, pad1), (pad0, pad1)))
    wk = jnp.asarray(k2d[::-1, ::-1], x.dtype)[None, None]   # (1, 1, kh, kw)
    wk = jnp.tile(wk, (c, 1, 1, 1))                          # depthwise (C, 1, kh, kw)
    return jax.lax.conv_general_dilated(
        xp, wk, window_strides=(1, 1), padding="VALID",
        dimension_numbers=("NCHW", "OIHW", "NCHW"), feature_group_count=c)


if __name__ == "__main__":
    b, c, h, w = 2, 4, 16, 16
    key = jax.random.PRNGKey(0)
    x = jax.random.normal(key, (b, c, h, w), jnp.float32)

    # Smoothing before a stride-2 downsample conv (common StyleGAN2 config):
    # resample_kernel=[1,3,3,1], downsample_factor=2, kernel_size=3 -> pad (1, 2).
    out = upfirdn_smooth_forward(x, (1, 3, 3, 1), upsample_factor=1,
                                 downsample_factor=2, kernel_size=3)
    out = jax.block_until_ready(out)
    ref = reference_forward(x, (1, 3, 3, 1), 1, 2, 3)
    assert out.shape == ref.shape == (b, c, h, w)
    assert jnp.allclose(out, ref, atol=1e-5, rtol=1e-5), float(jnp.max(jnp.abs(out - ref)))

    # Smoothing after a transposed-conv upsample: upsample_factor=2, kernel_size=3 -> pad (1, 1).
    out2 = upfirdn_smooth_forward(x, (1, 3, 3, 1), upsample_factor=2,
                                  downsample_factor=1, kernel_size=3)
    out2 = jax.block_until_ready(out2)
    ref2 = reference_forward(x, (1, 3, 3, 1), 2, 1, 3)
    assert out2.shape == ref2.shape
    assert jnp.allclose(out2, ref2, atol=1e-5, rtol=1e-5), float(jnp.max(jnp.abs(out2 - ref2)))

    print("KERNEL_OK")
</pallas_src>

<mosaic_0001>
module attributes {stable_mosaic.version = 11 : i64} {
  func.func @kernel(%arg0: i32, %arg1: i32, %arg2: memref<1x16x16x4xf32, #tpu.memory_space<vmem>>, %arg3: memref<1x16x16x4xf32, #tpu.memory_space<vmem>>, %arg4: memref<19x19x4xf32, #tpu.memory_space<vmem>>, %arg5: memref<19x16x4xf32, #tpu.memory_space<vmem>>) attributes {dimension_semantics = [#tpu.dimension_semantics<parallel>, #tpu.dimension_semantics<parallel>], iteration_bounds = array<i64: 2, 1>, scalar_prefetch = 0 : i64, scratch_operands = 2 : i64, tpu.core_type = #tpu.core_type<tc>, window_params = [{transform_indices = @transform_0, window_bounds = array<i64: 1, 16, 16, 4>}, {transform_indices = @transform_1, window_bounds = array<i64: 1, 16, 16, 4>}]} {
    %cst = arith.constant 0.000000e+00 : f32
    %0 = vector.broadcast %cst : f32 to vector<1x19x4xf32>
    %c0 = arith.constant 0 : index
    %c0_0 = arith.constant 0 : index
    %c0_1 = arith.constant 0 : index
    %1 = vector.load %arg4[%c0, %c0_0, %c0_1] : memref<19x19x4xf32, #tpu.memory_space<vmem>>, vector<1x19x4xf32>
    tpu.vector_store %arg4[%c0, %c0_0, %c0_1], %0 {strides = array<i32>} : memref<19x19x4xf32, #tpu.memory_space<vmem>>, vector<1x19x4xf32>,
    %cst_2 = arith.constant 0.000000e+00 : f32
    %2 = vector.broadcast %cst_2 : f32 to vector<19x1x4xf32>
    %c0_3 = arith.constant 0 : index
    %c0_4 = arith.constant 0 : index
    %c0_5 = arith.constant 0 : index
    %3 = vector.load %arg4[%c0_3, %c0_4, %c0_5] : memref<19x19x4xf32, #tpu.memory_space<vmem>>, vector<19x1x4xf32>
    tpu.vector_store %arg4[%c0_3, %c0_4, %c0_5], %2 {strides = array<i32>} : memref<19x19x4xf32, #tpu.memory_space<vmem>>, vector<19x1x4xf32>,
    %cst_6 = arith.constant 0.000000e+00 : f32
    %4 = vector.broadcast %cst_6 : f32 to vector<2x19x4xf32>
    %c17 = arith.constant 17 : index
    %c0_7 = arith.constant 0 : index
    %c0_8 = arith.constant 0 : index
    %5 = vector.load %arg4[%c17, %c0_7, %c0_8] : memref<19x19x4xf32, #tpu.memory_space<vmem>>, vector<2x19x4xf32>
    tpu.vector_store %arg4[%c17, %c0_7, %c0_8], %4 {strides = array<i32>} : memref<19x19x4xf32, #tpu.memory_space<vmem>>, vector<2x19x4xf32>,
    %cst_9 = arith.constant 0.000000e+00 : f32
    %6 = vector.broadcast %cst_9 : f32 to vector<19x2x4xf32>
    %c0_10 = arith.constant 0 : index
    %c17_11 = arith.constant 17 : index
    %c0_12 = arith.constant 0 : index
    %7 = vector.load %arg4[%c0_10, %c17_11, %c0_12] : memref<19x19x4xf32, #tpu.memory_space<vmem>>, vector<19x2x4xf32>
    tpu.vector_store %arg4[%c0_10, %c17_11, %c0_12], %6 {strides = array<i32>} : memref<19x19x4xf32, #tpu.memory_space<vmem>>, vector<19x2x4xf32>,
    %c0_13 = arith.constant 0 : index
    %c0_14 = arith.constant 0 : index
    %c0_15 = arith.constant 0 : index
    %c0_16 = arith.constant 0 : index
    %8 = vector.load %arg2[%c0_13, %c0_14, %c0_15, %c0_16] : memref<1x16x16x4xf32, #tpu.memory_space<vmem>>, vector<1x16x16x4xf32>
    %9 = vector.shape_cast %8 : vector<1x16x16x4xf32> to vector<16x16x4xf32>
    %c1 = arith.constant 1 : index
    %c1_17 = arith.constant 1 : index
    %c0_18 = arith.constant 0 : index
    %10 = vector.load %arg4[%c1, %c1_17, %c0_18] : memref<19x19x4xf32, #tpu.memory_space<vmem>>, vector<16x16x4xf32>
    tpu.vector_store %arg4[%c1, %c1_17, %c0_18], %9 {strides = array<i32>} : memref<19x19x4xf32, #tpu.memory_space<vmem>>, vector<16x16x4xf32>,
    %c0_19 = arith.constant 0 : index
    %c0_20 = arith.constant 0 : index
    %c0_21 = arith.constant 0 : index
    %11 = vector.load %arg4[%c0_19, %c0_20, %c0_21] : memref<19x19x4xf32, #tpu.memory_space<vmem>>, vector<19x16x4xf32>
    %cst_22 = arith.constant 1.250000e-01 : f32
    %12 = vector.broadcast %cst_22 : f32 to vector<19x16x4xf32>
    %13 = arith.mulf %12, %11 : vector<19x16x4xf32>
    %c0_23 = arith.constant 0 : index
    %c1_24 = arith.constant 1 : index
    %c0_25 = arith.constant 0 : index
    %14 = vector.load %arg4[%c0_23, %c1_24, %c0_25] : memref<19x19x4xf32, #tpu.memory_space<vmem>>, vector<19x16x4xf32>
    %cst_26 = arith.constant 3.750000e-01 : f32
    %15 = vector.broadcast %cst_26 : f32 to vector<19x16x4xf32>
    %16 = arith.mulf %15, %14 : vector<19x16x4xf32>
    %17 = arith.addf %13, %16 : vector<19x16x4xf32>
    %c0_27 = arith.constant 0 : index
    %c2 = arith.constant 2 : index
    %c0_28 = arith.constant 0 : index
    %18 = vector.load %arg4[%c0_27, %c2, %c0_28] : memref<19x19x4xf32, #tpu.memory_space<vmem>>, vector<19x16x4xf32>
    %cst_29 = arith.constant 3.750000e-01 : f32
    %19 = vector.broadcast %cst_29 : f32 to vector<19x16x4xf32>
    %20 = arith.mulf %19, %18 : vector<19x16x4xf32>
    %21 = arith.addf %17, %20 : vector<19x16x4xf32>
    %c0_30 = arith.constant 0 : index
    %c3 = arith.constant 3 : index
    %c0_31 = arith.constant 0 : index
    %22 = vector.load %arg4[%c0_30, %c3, %c0_31] : memref<19x19x4xf32, #tpu.memory_space<vmem>>, vector<19x16x4xf32>
    %cst_32 = arith.constant 1.250000e-01 : f32
    %23 = vector.broadcast %cst_32 : f32 to vector<19x16x4xf32>
    %24 = arith.mulf %23, %22 : vector<19x16x4xf32>
    %25 = arith.addf %21, %24 : vector<19x16x4xf32>
    %c0_33 = arith.constant 0 : index
    %c0_34 = arith.constant 0 : index
    %c0_35 = arith.constant 0 : index
    %26 = vector.load %arg5[%c0_33, %c0_34, %c0_35] : memref<19x16x4xf32, #tpu.memory_space<vmem>>, vector<19x16x4xf32>
    tpu.vector_store %arg5[%c0_33, %c0_34, %c0_35], %25 {strides = array<i32>} : memref<19x16x4xf32, #tpu.memory_space<vmem>>, vector<19x16x4xf32>,
    %c0_36 = arith.constant 0 : index
    %c0_37 = arith.constant 0 : index
    %c0_38 = arith.constant 0 : index
    %27 = vector.load %arg5[%c0_36, %c0_37, %c0_38] : memref<19x16x4xf32, #tpu.memory_space<vmem>>, vector<16x16x4xf32>
    %cst_39 = arith.constant 1.250000e-01 : f32
    %28 = vector.broadcast %cst_39 : f32 to vector<16x16x4xf32>
    %29 = arith.mulf %28, %27 : vector<16x16x4xf32>
    %c1_40 = arith.constant 1 : index
    %c0_41 = arith.constant 0 : index
    %c0_42 = arith.constant 0 : index
    %30 = vector.load %arg5[%c1_40, %c0_41, %c0_42] : memref<19x16x4xf32, #tpu.memory_space<vmem>>, vector<16x16x4xf32>
    %cst_43 = arith.constant 3.750000e-01 : f32
    %31 = vector.broadcast %cst_43 : f32 to vector<16x16x4xf32>
    %32 = arith.mulf %31, %30 : vector<16x16x4xf32>
    %33 = arith.addf %29, %32 : vector<16x16x4xf32>
    %c2_44 = arith.constant 2 : index
    %c0_45 = arith.constant 0 : index
    %c0_46 = arith.constant 0 : index
    %34 = vector.load %arg5[%c2_44, %c0_45, %c0_46] : memref<19x16x4xf32, #tpu.memory_space<vmem>>, vector<16x16x4xf32>
    %cst_47 = arith.constant 3.750000e-01 : f32
    %35 = vector.broadcast %cst_47 : f32 to vector<16x16x4xf32>
    %36 = arith.mulf %35, %34 : vector<16x16x4xf32>
    %37 = arith.addf %33, %36 : vector<16x16x4xf32>
    %c3_48 = arith.constant 3 : index
    %c0_49 = arith.constant 0 : index
    %c0_50 = arith.constant 0 : index
    %38 = vector.load %arg5[%c3_48, %c0_49, %c0_50] : memref<19x16x4xf32, #tpu.memory_space<vmem>>, vector<16x16x4xf32>
    %cst_51 = arith.constant 1.250000e-01 : f32
    %39 = vector.broadcast %cst_51 : f32 to vector<16x16x4xf32>
    %40 = arith.mulf %39, %38 : vector<16x16x4xf32>
    %41 = arith.addf %37, %40 : vector<16x16x4xf32>
    %c0_52 = arith.constant 0 : index
    %c0_53 = arith.constant 0 : index
    %c0_54 = arith.constant 0 : index
    %c0_55 = arith.constant 0 : index
    %42 = vector.load %arg3[%c0_52, %c0_53, %c0_54, %c0_55] : memref<1x16x16x4xf32, #tpu.memory_space<vmem>>, vector<1x16x16x4xf32>
    %43 = vector.shape_cast %42 : vector<1x16x16x4xf32> to vector<16x16x4xf32>
    %44 = vector.shape_cast %41 : vector<16x16x4xf32> to vector<1x16x16x4xf32>
    tpu.vector_store %arg3[%c0_52, %c0_53, %c0_54, %c0_55], %44 {strides = array<i32>} : memref<1x16x16x4xf32, #tpu.memory_space<vmem>>, vector<1x16x16x4xf32>,
    return
  }
  func.func @transform_0(%arg0: i32, %arg1: i32) -> (i32, i32, i32, i32) {
    %c0_i32 = arith.constant 0 : i32
    %c0_i32_0 = arith.constant 0 : i32
    %c0_i32_1 = arith.constant 0 : i32
    return %arg0, %c0_i32, %c0_i32_0, %arg1 : i32, i32, i32, i32
  }
  func.func @transform_1(%arg0: i32, %arg1: i32) -> (i32, i32, i32, i32) {
    %c0_i32 = arith.constant 0 : i32
    %c0_i32_0 = arith.constant 0 : i32
    %c0_i32_1 = arith.constant 0 : i32
    return %arg0, %c0_i32, %c0_i32_0, %arg1 : i32, i32, i32, i32
  }
}

</mosaic_0001>

<llo_original>
// kernel: tpu_custom_call.1
$region0: #{tpu_custom_call.1}
  #allocation0 [shape = 'u32[]', space=smem, size = 0x4, offset = 0x4, fixed_abs, tag = 'smem constant byte address 0x4 - core index']
  #allocation1 [shape = 'u32[72,128]{1,0:T(1,128)}', space=vmem, size = 0x9000, scoped, tag = 'internal scratch']
  #allocation2 [shape = 'f32[19,19,4]{2,1,0:T(8,128)}', space=vmem, size = 0x39000, scoped, tag = 'scratch operand']
  #allocation3 [shape = 'f32[19,16,4]{2,1,0:T(8,128)}', space=vmem, size = 0x26000, scoped, tag = 'scratch operand']
  %s0 = inlined_call_operand.vmem [shape: f32[2,16,16,4], index: 0, kind: input, shape index: {}]
  %s1 = inlined_call_operand.vmem [shape: f32[2,16,16,4], index: 1, kind: output, shape index: {}]
  %s2 = sld [smem:[#allocation0]]
  $region37: #{tpu_custom_call.1} parent=0
    _
  %s4 = ssub.s32 1, %s2
  %s5 = scalar_select 0, %s4, %s2
  loop: start=0, step=1, limit=4
  $region2: #{tpu_custom_call.1} parent=0 // loop_pre_header
    _
  $region3: #{tpu_custom_call.1} parent=0 // loop_header
    %s7 = sphi 0, %s11
    %p8 = scmp.ge.s32.totalorder %s7, 4
    %s14 = sphi 0, %s26
    %s15 = sphi 0, %s22
    %s16 = sphi 0, %s14
    %s17 = sphi 0, %s15
    %s18 = sphi 0, %s16
    %s19 = sphi 0, %s17
    %s31 = sphi 0, %s33
    %s34 = sphi 0, %s31
    %s35 = sphi 0, %s34
    %s51 = sphi 0, %s35
    %s59 = sphi 0, %s61
    %s62 = sphi 0, %s59
    %s63 = sphi 0, %s62
    %s79 = sphi 0, %s63
  $region4: #{tpu_custom_call.1} parent=0 // loop_header_branch
    %10 = sbr.rel (%p8) target = $region8
  $region5: #{tpu_custom_call.1} parent=0 // loop_body
    %s12 = ssub.s32 %s7, 1
    %s13 = ssub.s32 %s7, 2
    %s20 = sadd.s32 1, %s15
    %p21 = scmp.ge.s32.totalorder %s20, 1
    %s22 = scalar_select %p21, 0, %s20
    %s23 = sadd.s32 1, %s14
    %s24 = scalar_select %p21, %s23, %s14
    %p25 = scmp.ge.s32.totalorder %s24, 2
    %s26 = scalar_select %p25, 0, %s24
    %s27 = ssub.s32 %s14, %s26
    %s28 = ssub.s32 %s15, %s22
    %s29 = sor.u32 %s27, %s28
    %p30 = scmp.eq.s32.totalorder %s29, 0
    %s32 = sadd.s32 %s31, 1
    %s33 = scalar_select %p30, %s31, %s32
    %p36 = pneg %p30
    %p37 = scmp.eq.s32.totalorder %s7, 1
    %p38 = por %p36, %p37
    %p39 = scmp.ne.s32.totalorder %s31, %s34
    %p40 = scmp.eq.s32.totalorder %s7, 0
    %p41 = por %p39, %p40
    %p42 = scmp.ne.s32.totalorder %s31, %s34
    %p43 = scmp.eq.s32.totalorder %s12, 1
    %p44 = por %p42, %p43
    %p45 = scmp.ne.s32.totalorder %s34, %s35
    %p46 = scmp.eq.s32.totalorder %s12, 0
    %p47 = por %p45, %p46
    %p48 = scmp.ne.s32.totalorder %s34, %s35
    %p49 = scmp.eq.s32.totalorder %s13, 1
    %p50 = por %p48, %p49
    %p52 = scmp.ne.s32.totalorder %s35, %s51
    %p53 = scmp.eq.s32.totalorder %s13, 0
    %p54 = por %p52, %p53
    %s55 = ssub.s32 %s14, %s26
    %s56 = ssub.s32 %s15, %s22
    %s57 = sor.u32 %s55, %s56
    %p58 = scmp.eq.s32.totalorder %s57, 0
    %s60 = sadd.s32 %s59, 1
    %s61 = scalar_select %p58, %s59, %s60
    %p64 = pneg %p58
    %p65 = scmp.eq.s32.totalorder %s7, 1
    %p66 = por %p64, %p65
    %p67 = scmp.ne.s32.totalorder %s59, %s62
    %p68 = scmp.eq.s32.totalorder %s7, 0
    %p69 = por %p67, %p68
    %p70 = scmp.ne.s32.totalorder %s59, %s62
    %p71 = scmp.eq.s32.totalorder %s12, 1
    %p72 = por %p70, %p71
    %p73 = scmp.ne.s32.totalorder %s62, %s63
    %p74 = scmp.eq.s32.totalorder %s12, 0
    %p75 = por %p73, %p74
    %p76 = scmp.ne.s32.totalorder %s62, %s63
    %p77 = scmp.eq.s32.totalorder %s13, 1
    %p78 = por %p76, %p77
    %p80 = scmp.ne.s32.totalorder %s63, %s79
    %p81 = scmp.eq.s32.totalorder %s13, 0
    %p82 = por %p80, %p81
    %p83 = scmp.le.s32.totalorder 1, %s7
    %p84 = scmp.lt.s32.totalorder %s7, 3
    %p85 = pnand %p83, %p84
    %p86 = pneg %p85
    // Predicated region
    $region9: #{tpu_custom_call.1} parent=5 // pred_check
      _
    $region10: #{tpu_custom_call.1} parent=5 // pred_check_branch
      %88 = sbr.rel (%p85) target = $region12
    $region11: #{tpu_custom_call.1} parent=5 // pred_region
      %s89 = ssub.s32 %s7, 1
    $region12: #{tpu_custom_call.1} parent=5 // pred_fallthru
      _
    %p90 = scmp.lt.s32.totalorder %s7, 2
    // Predicated region
    $region13: #{tpu_custom_call.1} parent=5 // pred_check
      %p91 = pneg %p90
    $region14: #{tpu_custom_call.1} parent=5 // pred_check_branch
      %93 = sbr.rel (%p91) target = $region16
    $region15: #{tpu_custom_call.1} parent=5 // pred_region
      // Predicated region
      $region17: #{tpu_custom_call.1} parent=15 // pred_check
        %p94 = pneg %p41
      $region18: #{tpu_custom_call.1} parent=15 // pred_check_branch
        %96 = sbr.rel (%p94) target = $region20
      $region19: #{tpu_custom_call.1} parent=15 // pred_region
        %p97 = scmp.lt.s32.totalorder %s14, 1
        %s98 = scalar_select %p97, %s14, 1
        %p99 = scmp.lt.s32.totalorder %s15, 0
        %s100 = scalar_select %p99, %s15, 0
        %s101 = smul.addr %s98, 32
        %s102 = sadd.s32 %s100, %s101
        %s103 = smul.addr %s102, 8
        %s104 = scalar_lea.vmem %s0, %s103
      $region20: #{tpu_custom_call.1} parent=15 // pred_fallthru
        _
    $region16: #{tpu_custom_call.1} parent=5 // pred_fallthru
      _
    %p105 = scmp.le.s32.totalorder 1, %s7
    %p106 = scmp.lt.s32.totalorder %s7, 3
    %p107 = pnand %p105, %p106
    %p108 = pneg %p107
    // Predicated region
    $region21: #{tpu_custom_call.1} parent=5 // pred_check
      _
    $region22: #{tpu_custom_call.1} parent=5 // pred_check_branch
      %110 = sbr.rel (%p107) target = $region24
    $region23: #{tpu_custom_call.1} parent=5 // pred_region
      %s111 = ssub.s32 %s7, 1
      %p112 = scmp.lt.s32.totalorder %s16, 1
      %s113 = scalar_select %p112, %s16, 1
      %p114 = scmp.lt.s32.totalorder %s17, 0
      %s115 = scalar_select %p114, %s17, 0
      %s116 = smul.addr %s113, 32
      %s117 = sadd.s32 %s115, %s116
      %s118 = smul.addr %s117, 8
      %s119 = scalar_lea.vmem %s0, %s118
      %p120 = pneg %p47
      %p121 = pneg %p44
      %p122 = pneg %p75
      %p123 = pneg %p72
      %p124 = scmp.lt.s32.totalorder %s16, 1
      %s125 = scalar_select %p124, %s16, 1
      %p126 = scmp.lt.s32.totalorder %s17, 0
      %s127 = scalar_select %p126, %s17, 0
      %s128 = smul.addr %s125, 32
      %s129 = sadd.s32 %s127, %s128
      %s130 = smul.addr %s129, 8
      %s131 = scalar_lea.vmem %s1, %s130
      %p132 = scmp.lt.s32.totalorder %s16, 1
      %s133 = scalar_select %p132, %s16, 1
      %p134 = scmp.lt.s32.totalorder %s17, 0
      %s135 = scalar_select %p134, %s17, 0
      %s136 = smul.addr %s133, 32
      %s137 = sadd.s32 %s135, %s136
      %s138 = smul.addr %s137, 8
      %s139 = scalar_lea.vmem %s0, %s138
      %p140 = scmp.lt.s32.totalorder %s16, 1
      %s141 = scalar_select %p140, %s16, 1
      %p142 = scmp.lt.s32.totalorder %s17, 0
      %s143 = scalar_select %p142, %s17, 0
      %s144 = smul.addr %s141, 32
      %s145 = sadd.s32 %s143, %s144
      %s146 = smul.addr %s145, 8
      %s147 = scalar_lea.vmem %s1, %s146
      %vm148 = vcmask 31744
      %149 = vst.msk [vmem:[#allocation2] sm:$0xff] %vm148, 0.0
      %150 = vst.msk [vmem:[#allocation2 + $0x8] sm:$0xff] %vm148, 0.0
      %vm151 = vcmask 26624
      %152 = vst.msk [vmem:[#allocation2 + $0x10] sm:$0x7] %vm151, 0.0
      %vm153 = vcmask 24576
      %154 = vst.msk [vmem:[#allocation2] sm:$0x1] %vm153, 0.0
      %155 = vst.msk [vmem:[#allocation2 + $0x18] sm:$0x1] %vm153, 0.0
      %156 = vst.msk [vmem:[#allocation2 + $0x30] sm:$0x1] %vm153, 0.0
      %157 = vst.msk [vmem:[#allocation2 + $0x48] sm:$0x1] %vm153, 0.0
      %158 = vst.msk [vmem:[#allocation2 + $0x60] sm:$0x1] %vm153, 0.0
      %159 = vst.msk [vmem:[#allocation2 + $0x78] sm:$0x1] %vm153, 0.0
      %160 = vst.msk [vmem:[#allocation2 + $0x90] sm:$0x1] %vm153, 0.0
      %161 = vst.msk [vmem:[#allocation2 + $0xa8] sm:$0x1] %vm153, 0.0
      %162 = vst.msk [vmem:[#allocation2 + $0xc0] sm:$0x1] %vm153, 0.0
      %163 = vst.msk [vmem:[#allocation2 + $0xd8] sm:$0x1] %vm153, 0.0
      %164 = vst.msk [vmem:[#allocation2 + $0xf0] sm:$0x1] %vm153, 0.0
      %165 = vst.msk [vmem:[#allocation2 + $0x108] sm:$0x1] %vm153, 0.0
      %166 = vst.msk [vmem:[#allocation2 + $0x120] sm:$0x1] %vm153, 0.0
      %167 = vst.msk [vmem:[#allocation2 + $0x138] sm:$0x1] %vm153, 0.0
      %168 = vst.msk [vmem:[#allocation2 + $0x150] sm:$0x1] %vm153, 0.0
      %169 = vst.msk [vmem:[#allocation2 + $0x168] sm:$0x1] %vm153, 0.0
      %170 = vst.msk [vmem:[#allocation2 + $0x180] sm:$0x1] %vm153, 0.0
      %171 = vst.msk [vmem:[#allocation2 + $0x198] sm:$0x1] %vm153, 0.0
      %172 = vst.msk [vmem:[#allocation2 + $0x1b0] sm:$0x1] %vm153, 0.0
      %s173 = scalar_lea.vmem [#allocation2], 408
      %174 = vst.msk [vmem:[%s173] sm:$0xff] %vm148, 0.0
      %175 = vst.msk [vmem:[%s173 + $0x8] sm:$0xff] %vm148, 0.0
      %176 = vst.msk [vmem:[%s173 + $0x10] sm:$0x7] %vm151, 0.0
      %177 = vst.msk [vmem:[%s173 + $0x18] sm:$0xff] %vm148, 0.0
      %178 = vst.msk [vmem:[%s173 + $0x20] sm:$0xff] %vm148, 0.0
      %179 = vst.msk [vmem:[%s173 + $0x28] sm:$0x7] %vm151, 0.0
      %vm180 = vcmask 25600
      %181 = vst.msk [vmem:[#allocation2 + $0x11] sm:$0x3] %vm180, 0.0
      %182 = vst.msk [vmem:[#allocation2 + $0x29] sm:$0x3] %vm180, 0.0
      %183 = vst.msk [vmem:[#allocation2 + $0x41] sm:$0x3] %vm180, 0.0
      %184 = vst.msk [vmem:[#allocation2 + $0x59] sm:$0x3] %vm180, 0.0
      %185 = vst.msk [vmem:[#allocation2 + $0x71] sm:$0x3] %vm180, 0.0
      %186 = vst.msk [vmem:[#allocation2 + $0x89] sm:$0x3] %vm180, 0.0
      %187 = vst.msk [vmem:[#allocation2 + $0xa1] sm:$0x3] %vm180, 0.0
      %188 = vst.msk [vmem:[#allocation2 + $0xb9] sm:$0x3] %vm180, 0.0
      %189 = vst.msk [vmem:[#allocation2 + $0xd1] sm:$0x3] %vm180, 0.0
      %190 = vst.msk [vmem:[#allocation2 + $0xe9] sm:$0x3] %vm180, 0.0
      %191 = vst.msk [vmem:[#allocation2 + $0x101] sm:$0x3] %vm180, 0.0
      %192 = vst.msk [vmem:[#allocation2 + $0x119] sm:$0x3] %vm180, 0.0
      %193 = vst.msk [vmem:[#allocation2 + $0x131] sm:$0x3] %vm180, 0.0
      %194 = vst.msk [vmem:[#allocation2 + $0x149] sm:$0x3] %vm180, 0.0
      %195 = vst.msk [vmem:[#allocation2 + $0x161] sm:$0x3] %vm180, 0.0
      %196 = vst.msk [vmem:[#allocation2 + $0x179] sm:$0x3] %vm180, 0.0
      %197 = vst.msk [vmem:[#allocation2 + $0x191] sm:$0x3] %vm180, 0.0
      %198 = vst.msk [vmem:[#allocation2 + $0x1a9] sm:$0x3] %vm180, 0.0
      %199 = vst.msk [vmem:[#allocation2 + $0x1c1] sm:$0x3] %vm180, 0.0
      %v200 = vld [vmem:[%s139] sm:$0xff]
      %v201 = vld [vmem:[%s139 + $0x8] sm:$0xff]
      %v202 = vld [vmem:[%s139 + $0x10] sm:$0xff]
      %v203 = vld [vmem:[%s139 + $0x18] sm:$0xff]
      %v204 = vld [vmem:[%s139 + $0x20] sm:$0xff]
      %v205 = vld [vmem:[%s139 + $0x28] sm:$0xff]
      %v206 = vld [vmem:[%s139 + $0x30] sm:$0xff]
      %v207 = vld [vmem:[%s139 + $0x38] sm:$0xff]
      %v208 = vld [vmem:[%s139 + $0x40] sm:$0xff]
      %v209 = vld [vmem:[%s139 + $0x48] sm:$0xff]
      %v210 = vld [vmem:[%s139 + $0x50] sm:$0xff]
      %v211 = vld [vmem:[%s139 + $0x58] sm:$0xff]
      %v212 = vld [vmem:[%s139 + $0x60] sm:$0xff]
      %v213 = vld [vmem:[%s139 + $0x68] sm:$0xff]
      %v214 = vld [vmem:[%s139 + $0x70] sm:$0xff]
      %v215 = vld [vmem:[%s139 + $0x78] sm:$0xff]
      %v216 = vld [vmem:[%s139 + $0x80] sm:$0xff]
      %v217 = vld [vmem:[%s139 + $0x88] sm:$0xff]
      %v218 = vld [vmem:[%s139 + $0x90] sm:$0xff]
      %v219 = vld [vmem:[%s139 + $0x98] sm:$0xff]
      %v220 = vld [vmem:[%s139 + $0xa0] sm:$0xff]
      %v221 = vld [vmem:[%s139 + $0xa8] sm:$0xff]
      %v222 = vld [vmem:[%s139 + $0xb0] sm:$0xff]
      %v223 = vld [vmem:[%s139 + $0xb8] sm:$0xff]
      %v224 = vld [vmem:[%s139 + $0xc0] sm:$0xff]
      %v225 = vld [vmem:[%s139 + $0xc8] sm:$0xff]
      %v226 = vld [vmem:[%s139 + $0xd0] sm:$0xff]
      %v227 = vld [vmem:[%s139 + $0xd8] sm:$0xff]
      %v228 = vld [vmem:[%s139 + $0xe0] sm:$0xff]
      %v229 = vld [vmem:[%s139 + $0xe8] sm:$0xff]
      %v230 = vld [vmem:[%s139 + $0xf0] sm:$0xff]
      %v231 = vld [vmem:[%s139 + $0xf8] sm:$0xff]
      %s232 = scalar_lea.vmem [#allocation2], 24
      %233 = vst.msk [vmem:[%s232 + $0x1] sm:$0xff] %vm148, %v200
      %234 = vst.msk [vmem:[%s232 + $0x9] sm:$0xff] %vm148, %v201
      %235 = vst.msk [vmem:[%s232 + $0x19] sm:$0xff] %vm148, %v202
      %236 = vst.msk [vmem:[%s232 + $0x21] sm:$0xff] %vm148, %v203
      %237 = vst.msk [vmem:[%s232 + $0x31] sm:$0xff] %vm148, %v204
      %238 = vst.msk [vmem:[%s232 + $0x39] sm:$0xff] %vm148, %v205
      %239 = vst.msk [vmem:[%s232 + $0x49] sm:$0xff] %vm148, %v206
      %240 = vst.msk [vmem:[%s232 + $0x51] sm:$0xff] %vm148, %v207
      %241 = vst.msk [vmem:[%s232 + $0x61] sm:$0xff] %vm148, %v208
      %242 = vst.msk [vmem:[%s232 + $0x69] sm:$0xff] %vm148, %v209
      %243 = vst.msk [vmem:[%s232 + $0x79] sm:$0xff] %vm148, %v210
      %244 = vst.msk [vmem:[%s232 + $0x81] sm:$0xff] %vm148, %v211
      %245 = vst.msk [vmem:[%s232 + $0x91] sm:$0xff] %vm148, %v212
      %246 = vst.msk [vmem:[%s232 + $0x99] sm:$0xff] %vm148, %v213
      %247 = vst.msk [vmem:[%s232 + $0xa9] sm:$0xff] %vm148, %v214
      %248 = vst.msk [vmem:[%s232 + $0xb1] sm:$0xff] %vm148, %v215
      %249 = vst.msk [vmem:[%s232 + $0xc1] sm:$0xff] %vm148, %v216
      %250 = vst.msk [vmem:[%s232 + $0xc9] sm:$0xff] %vm148, %v217
      %251 = vst.msk [vmem:[%s232 + $0xd9] sm:$0xff] %vm148, %v218
      %252 = vst.msk [vmem:[%s232 + $0xe1] sm:$0xff] %vm148, %v219
      %253 = vst.msk [vmem:[%s232 + $0xf1] sm:$0xff] %vm148, %v220
      %254 = vst.msk [vmem:[%s232 + $0xf9] sm:$0xff] %vm148, %v221
      %255 = vst.msk [vmem:[%s232 + $0x109] sm:$0xff] %vm148, %v222
      %256 = vst.msk [vmem:[%s232 + $0x111] sm:$0xff] %vm148, %v223
      %257 = vst.msk [vmem:[%s232 + $0x121] sm:$0xff] %vm148, %v224
      %258 = vst.msk [vmem:[%s232 + $0x129] sm:$0xff] %vm148, %v225
      %259 = vst.msk [vmem:[%s232 + $0x139] sm:$0xff] %vm148, %v226
      %260 = vst.msk [vmem:[%s232 + $0x141] sm:$0xff] %vm148, %v227
      %261 = vst.msk [vmem:[%s232 + $0x151] sm:$0xff] %vm148, %v228
      %262 = vst.msk [vmem:[%s232 + $0x159] sm:$0xff] %vm148, %v229
      %263 = vst.msk [vmem:[%s232 + $0x169] sm:$0xff] %vm148, %v230
      %264 = vst.msk [vmem:[%s232 + $0x171] sm:$0xff] %vm148, %v231
      %v265 = vld [vmem:[#allocation2] sm:$0xff]
      %v266 = vld [vmem:[#allocation2 + $0x8] sm:$0xff]
      %v267 = vld [vmem:[#allocation2 + $0x18] sm:$0xff]
      %v268 = vld [vmem:[#allocation2 + $0x20] sm:$0xff]
      %v269 = vld [vmem:[#allocation2 + $0x30] sm:$0xff]
      %v270 = vld [vmem:[#allocation2 + $0x38] sm:$0xff]
      %v271 = vld [vmem:[#allocation2 + $0x48] sm:$0xff]
      %v272 = vld [vmem:[#allocation2 + $0x50] sm:$0xff]
      %v273 = vld [vmem:[#allocation2 + $0x60] sm:$0xff]
      %v274 = vld [vmem:[#allocation2 + $0x68] sm:$0xff]
      %v275 = vld [vmem:[#allocation2 + $0x78] sm:$0xff]
      %v276 = vld [vmem:[#allocation2 + $0x80] sm:$0xff]
      %v277 = vld [vmem:[#allocation2 + $0x90] sm:$0xff]
      %v278 = vld [vmem:[#allocation2 + $0x98] sm:$0xff]
      %v279 = vld [vmem:[#allocation2 + $0xa8] sm:$0xff]
      %v280 = vld [vmem:[#allocation2 + $0xb0] sm:$0xff]
      %v281 = vld [vmem:[#allocation2 + $0xc0] sm:$0xff]
      %v282 = vld [vmem:[#allocation2 + $0xc8] sm:$0xff]
      %v283 = vld [vmem:[#allocation2 + $0xd8] sm:$0xff]
      %v284 = vld [vmem:[#allocation2 + $0xe0] sm:$0xff]
      %v285 = vld [vmem:[#allocation2 + $0xf0] sm:$0xff]
      %v286 = vld [vmem:[#allocation2 + $0xf8] sm:$0xff]
      %v287 = vld [vmem:[#allocation2 + $0x108] sm:$0xff]
      %v288 = vld [vmem:[#allocation2 + $0x110] sm:$0xff]
      %v289 = vld [vmem:[#allocation2 + $0x120] sm:$0xff]
      %v290 = vld [vmem:[#allocation2 + $0x128] sm:$0xff]
      %v291 = vld [vmem:[#allocation2 + $0x138] sm:$0xff]
      %v292 = vld [vmem:[#allocation2 + $0x140] sm:$0xff]
      %v293 = vld [vmem:[#allocation2 + $0x150] sm:$0xff]
      %v294 = vld [vmem:[#allocation2 + $0x158] sm:$0xff]
      %v295 = vld [vmem:[#allocation2 + $0x168] sm:$0xff]
      %v296 = vld [vmem:[#allocation2 + $0x170] sm:$0xff]
      %v297 = vld [vmem:[#allocation2 + $0x180] sm:$0xff]
      %v298 = vld [vmem:[#allocation2 + $0x188] sm:$0xff]
      %v299 = vld [vmem:[#allocation2 + $0x198] sm:$0xff]
      %v300 = vld [vmem:[#allocation2 + $0x1a0] sm:$0xff]
      %v301 = vld [vmem:[#allocation2 + $0x1b0] sm:$0xff]
      %v302 = vld [vmem:[#allocation2 + $0x1b8] sm:$0xff]
      %v303 = vmul.f32 %v265, 0.125
      %v304 = vmul.f32 %v266, 0.125
      %v305 = vmul.f32 %v267, 0.125
      %v306 = vmul.f32 %v268, 0.125
      %v307 = vmul.f32 %v269, 0.125
      %v308 = vmul.f32 %v270, 0.125
      %v309 = vmul.f32 %v271, 0.125
      %v310 = vmul.f32 %v272, 0.125
      %v311 = vmul.f32 %v273, 0.125
      %v312 = vmul.f32 %v274, 0.125
      %v313 = vmul.f32 %v275, 0.125
      %v314 = vmul.f32 %v276, 0.125
      %v315 = vmul.f32 %v277, 0.125
      %v316 = vmul.f32 %v278, 0.125
      %v317 = vmul.f32 %v279, 0.125
      %v318 = vmul.f32 %v280, 0.125
      %v319 = vmul.f32 %v281, 0.125
      %v320 = vmul.f32 %v282, 0.125
      %v321 = vmul.f32 %v283, 0.125
      %v322 = vmul.f32 %v284, 0.125
      %v323 = vmul.f32 %v285, 0.125
      %v324 = vmul.f32 %v286, 0.125
      %v325 = vmul.f32 %v287, 0.125
      %v326 = vmul.f32 %v288, 0.125
      %v327 = vmul.f32 %v289, 0.125
      %v328 = vmul.f32 %v290, 0.125
      %v329 = vmul.f32 %v291, 0.125
      %v330 = vmul.f32 %v292, 0.125
      %v331 = vmul.f32 %v293, 0.125
      %v332 = vmul.f32 %v294, 0.125
      %v333 = vmul.f32 %v295, 0.125
      %v334 = vmul.f32 %v296, 0.125
      %v335 = vmul.f32 %v297, 0.125
      %v336 = vmul.f32 %v298, 0.125
      %v337 = vmul.f32 %v299, 0.125
      %v338 = vmul.f32 %v300, 0.125
      %v339 = vmul.f32 %v301, 0.125
      %v340 = vmul.f32 %v302, 0.125
      %v341 = vld [vmem:[#allocation2 + $0x1] sm:$0xff]
      %v342 = vld [vmem:[#allocation2 + $0x9] sm:$0xff]
      %v343 = vld [vmem:[#allocation2 + $0x19] sm:$0xff]
      %v344 = vld [vmem:[#allocation2 + $0x21] sm:$0xff]
      %v345 = vld [vmem:[#allocation2 + $0x31] sm:$0xff]
      %v346 = vld [vmem:[#allocation2 + $0x39] sm:$0xff]
      %v347 = vld [vmem:[#allocation2 + $0x49] sm:$0xff]
      %v348 = vld [vmem:[#allocation2 + $0x51] sm:$0xff]
      %v349 = vld [vmem:[#allocation2 + $0x61] sm:$0xff]
      %v350 = vld [vmem:[#allocation2 + $0x69] sm:$0xff]
      %v351 = vld [vmem:[#allocation2 + $0x79] sm:$0xff]
      %v352 = vld [vmem:[#allocation2 + $0x81] sm:$0xff]
      %v353 = vld [vmem:[#allocation2 + $0x91] sm:$0xff]
      %v354 = vld [vmem:[#allocation2 + $0x99] sm:$0xff]
      %v355 = vld [vmem:[#allocation2 + $0xa9] sm:$0xff]
      %v356 = vld [vmem:[#allocation2 + $0xb1] sm:$0xff]
      %v357 = vld [vmem:[#allocation2 + $0xc1] sm:$0xff]
      %v358 = vld [vmem:[#allocation2 + $0xc9] sm:$0xff]
      %v359 = vld [vmem:[#allocation2 + $0xd9] sm:$0xff]
      %v360 = vld [vmem:[#allocation2 + $0xe1] sm:$0xff]
      %v361 = vld [vmem:[#allocation2 + $0xf1] sm:$0xff]
      %v362 = vld [vmem:[#allocation2 + $0xf9] sm:$0xff]
      %v363 = vld [vmem:[#allocation2 + $0x109] sm:$0xff]
      %v364 = vld [vmem:[#allocation2 + $0x111] sm:$0xff]
      %v365 = vld [vmem:[#allocation2 + $0x121] sm:$0xff]
      %v366 = vld [vmem:[#allocation2 + $0x129] sm:$0xff]
      %v367 = vld [vmem:[#allocation2 + $0x139] sm:$0xff]
      %v368 = vld [vmem:[#allocation2 + $0x141] sm:$0xff]
      %v369 = vld [vmem:[#allocation2 + $0x151] sm:$0xff]
      %v370 = vld [vmem:[#allocation2 + $0x159] sm:$0xff]
      %v371 = vld [vmem:[#allocation2 + $0x169] sm:$0xff]
      %v372 = vld [vmem:[#allocation2 + $0x171] sm:$0xff]
      %v373 = vld [vmem:[#allocation2 + $0x181] sm:$0xff]
      %v374 = vld [vmem:[#allocation2 + $0x189] sm:$0xff]
      %v375 = vld [vmem:[#allocation2 + $0x199] sm:$0xff]
      %v376 = vld [vmem:[#allocation2 + $0x1a1] sm:$0xff]
      %v377 = vld [vmem:[#allocation2 + $0x1b1] sm:$0xff]
      %v378 = vld [vmem:[#allocation2 + $0x1b9] sm:$0xff]
      %v379 = vmul.f32 %v341, 0.375
      %v380 = vmul.f32 %v342, 0.375
      %v381 = vmul.f32 %v343, 0.375
      %v382 = vmul.f32 %v344, 0.375
      %v383 = vmul.f32 %v345, 0.375
      %v384 = vmul.f32 %v346, 0.375
      %v385 = vmul.f32 %v347, 0.375
      %v386 = vmul.f32 %v348, 0.375
      %v387 = vmul.f32 %v349, 0.375
      %v388 = vmul.f32 %v350, 0.375
      %v389 = vmul.f32 %v351, 0.375
      %v390 = vmul.f32 %v352, 0.375
      %v391 = vmul.f32 %v353, 0.375
      %v392 = vmul.f32 %v354, 0.375
      %v393 = vmul.f32 %v355, 0.375
      %v394 = vmul.f32 %v356, 0.375
      %v395 = vmul.f32 %v357, 0.375
      %v396 = vmul.f32 %v358, 0.375
      %v397 = vmul.f32 %v359, 0.375
      %v398 = vmul.f32 %v360, 0.375
      %v399 = vmul.f32 %v361, 0.375
      %v400 = vmul.f32 %v362, 0.375
      %v401 = vmul.f32 %v363, 0.375
      %v402 = vmul.f32 %v364, 0.375
      %v403 = vmul.f32 %v365, 0.375
      %v404 = vmul.f32 %v366, 0.375
      %v405 = vmul.f32 %v367, 0.375
      %v406 = vmul.f32 %v368, 0.375
      %v407 = vmul.f32 %v369, 0.375
      %v408 = vmul.f32 %v370, 0.375
      %v409 = vmul.f32 %v371, 0.375
      %v410 = vmul.f32 %v372, 0.375
      %v411 = vmul.f32 %v373, 0.375
      %v412 = vmul.f32 %v374, 0.375
      %v413 = vmul.f32 %v375, 0.375
      %v414 = vmul.f32 %v376, 0.375
      %v415 = vmul.f32 %v377, 0.375
      %v416 = vmul.f32 %v378, 0.375
      %v417 = vadd.f32 %v303, %v379
      %v418 = vadd.f32 %v304, %v380
      %v419 = vadd.f32 %v305, %v381
      %v420 = vadd.f32 %v306, %v382
      %v421 = vadd.f32 %v307, %v383
      %v422 = vadd.f32 %v308, %v384
      %v423 = vadd.f32 %v309, %v385
      %v424 = vadd.f32 %v310, %v386
      %v425 = vadd.f32 %v311, %v387
      %v426 = vadd.f32 %v312, %v388
      %v427 = vadd.f32 %v313, %v389
      %v428 = vadd.f32 %v314, %v390
      %v429 = vadd.f32 %v315, %v391
      %v430 = vadd.f32 %v316, %v392
      %v431 = vadd.f32 %v317, %v393
      %v432 = vadd.f32 %v318, %v394
      %v433 = vadd.f32 %v319, %v395
      %v434 = vadd.f32 %v320, %v396
      %v435 = vadd.f32 %v321, %v397
      %v436 = vadd.f32 %v322, %v398
      %v437 = vadd.f32 %v323, %v399
      %v438 = vadd.f32 %v324, %v400
      %v439 = vadd.f32 %v325, %v401
      %v440 = vadd.f32 %v326, %v402
      %v441 = vadd.f32 %v327, %v403
      %v442 = vadd.f32 %v328, %v404
      %v443 = vadd.f32 %v329, %v405
      %v444 = vadd.f32 %v330, %v406
      %v445 = vadd.f32 %v331, %v407
      %v446 = vadd.f32 %v332, %v408
      %v447 = vadd.f32 %v333, %v409
      %v448 = vadd.f32 %v334, %v410
      %v449 = vadd.f32 %v335, %v411
      %v450 = vadd.f32 %v336, %v412
      %v451 = vadd.f32 %v337, %v413
      %v452 = vadd.f32 %v338, %v414
      %v453 = vadd.f32 %v339, %v415
      %v454 = vadd.f32 %v340, %v416
      %v455 = vld [vmem:[#allocation2 + $0x2] sm:$0xff]
      %v456 = vld [vmem:[#allocation2 + $0xa] sm:$0xff]
      %v457 = vld [vmem:[#allocation2 + $0x1a] sm:$0xff]
      %v458 = vld [vmem:[#allocation2 + $0x22] sm:$0xff]
      %v459 = vld [vmem:[#allocation2 + $0x32] sm:$0xff]
      %v460 = vld [vmem:[#allocation2 + $0x3a] sm:$0xff]
      %v461 = vld [vmem:[#allocation2 + $0x4a] sm:$0xff]
      %v462 = vld [vmem:[#allocation2 + $0x52] sm:$0xff]
      %v463 = vld [vmem:[#allocation2 + $0x62] sm:$0xff]
      %v464 = vld [vmem:[#allocation2 + $0x6a] sm:$0xff]
      %v465 = vld [vmem:[#allocation2 + $0x7a] sm:$0xff]
      %v466 = vld [vmem:[#allocation2 + $0x82] sm:$0xff]
      %v467 = vld [vmem:[#allocation2 + $0x92] sm:$0xff]
      %v468 = vld [vmem:[#allocation2 + $0x9a] sm:$0xff]
      %v469 = vld [vmem:[#allocation2 + $0xaa] sm:$0xff]
      %v470 = vld [vmem:[#allocation2 + $0xb2] sm:$0xff]
      %v471 = vld [vmem:[#allocation2 + $0xc2] sm:$0xff]
      %v472 = vld [vmem:[#allocation2 + $0xca] sm:$0xff]
      %v473 = vld [vmem:[#allocation2 + $0xda] sm:$0xff]
      %v474 = vld [vmem:[#allocation2 + $0xe2] sm:$0xff]
      %v475 = vld [vmem:[#allocation2 + $0xf2] sm:$0xff]
      %v476 = vld [vmem:[#allocation2 + $0xfa] sm:$0xff]
      %v477 = vld [vmem:[#allocation2 + $0x10a] sm:$0xff]
      %v478 = vld [vmem:[#allocation2 + $0x112] sm:$0xff]
      %v479 = vld [vmem:[#allocation2 + $0x122] sm:$0xff]
      %v480 = vld [vmem:[#allocation2 + $0x12a] sm:$0xff]
      %v481 = vld [vmem:[#allocation2 + $0x13a] sm:$0xff]
      %v482 = vld [vmem:[#allocation2 + $0x142] sm:$0xff]
      %v483 = vld [vmem:[#allocation2 + $0x152] sm:$0xff]
      %v484 = vld [vmem:[#allocation2 + $0x15a] sm:$0xff]
      %v485 = vld [vmem:[#allocation2 + $0x16a] sm:$0xff]
      %v486 = vld [vmem:[#allocation2 + $0x172] sm:$0xff]
      %v487 = vld [vmem:[#allocation2 + $0x182] sm:$0xff]
      %v488 = vld [vmem:[#allocation2 + $0x18a] sm:$0xff]
      %v489 = vld [vmem:[#allocation2 + $0x19a] sm:$0xff]
      %v490 = vld [vmem:[#allocation2 + $0x1a2] sm:$0xff]
      %v491 = vld [vmem:[#allocation2 + $0x1b2] sm:$0xff]
      %v492 = vld [vmem:[#allocation2 + $0x1ba] sm:$0xff]
      %v493 = vmul.f32 %v455, 0.375
      %v494 = vmul.f32 %v456, 0.375
      %v495 = vmul.f32 %v457, 0.375
      %v496 = vmul.f32 %v458, 0.375
      %v497 = vmul.f32 %v459, 0.375
      %v498 = vmul.f32 %v460, 0.375
      %v499 = vmul.f32 %v461, 0.375
      %v500 = vmul.f32 %v462, 0.375
      %v501 = vmul.f32 %v463, 0.375
      %v502 = vmul.f32 %v464, 0.375
      %v503 = vmul.f32 %v465, 0.375
      %v504 = vmul.f32 %v466, 0.375
      %v505 = vmul.f32 %v467, 0.375
      %v506 = vmul.f32 %v468, 0.375
      %v507 = vmul.f32 %v469, 0.375
      %v508 = vmul.f32 %v470, 0.375
      %v509 = vmul.f32 %v471, 0.375
      %v510 = vmul.f32 %v472, 0.375
      %v511 = vmul.f32 %v473, 0.375
      %v512 = vmul.f32 %v474, 0.375
      %v513 = vmul.f32 %v475, 0.375
      %v514 = vmul.f32 %v476, 0.375
      %v515 = vmul.f32 %v477, 0.375
      %v516 = vmul.f32 %v478, 0.375
      %v517 = vmul.f32 %v479, 0.375
      %v518 = vmul.f32 %v480, 0.375
      %v519 = vmul.f32 %v481, 0.375
      %v520 = vmul.f32 %v482, 0.375
      %v521 = vmul.f32 %v483, 0.375
      %v522 = vmul.f32 %v484, 0.375
      %v523 = vmul.f32 %v485, 0.375
      %v524 = vmul.f32 %v486, 0.375
      %v525 = vmul.f32 %v487, 0.375
      %v526 = vmul.f32 %v488, 0.375
      %v527 = vmul.f32 %v489, 0.375
      %v528 = vmul.f32 %v490, 0.375
      %v529 = vmul.f32 %v491, 0.375
      %v530 = vmul.f32 %v492, 0.375
      %v531 = vadd.f32 %v417, %v493
      %v532 = vadd.f32 %v418, %v494
      %v533 = vadd.f32 %v419, %v495
      %v534 = vadd.f32 %v420, %v496
      %v535 = vadd.f32 %v421, %v497
      %v536 = vadd.f32 %v422, %v498
      %v537 = vadd.f32 %v423, %v499
      %v538 = vadd.f32 %v424, %v500
      %v539 = vadd.f32 %v425, %v501
      %v540 = vadd.f32 %v426, %v502
      %v541 = vadd.f32 %v427, %v503
      %v542 = vadd.f32 %v428, %v504
      %v543 = vadd.f32 %v429, %v505
      %v544 = vadd.f32 %v430, %v506
      %v545 = vadd.f32 %v431, %v507
      %v546 = vadd.f32 %v432, %v508
      %v547 = vadd.f32 %v433, %v509
      %v548 = vadd.f32 %v434, %v510
      %v549 = vadd.f32 %v435, %v511
      %v550 = vadd.f32 %v436, %v512
      %v551 = vadd.f32 %v437, %v513
      %v552 = vadd.f32 %v438, %v514
      %v553 = vadd.f32 %v439, %v515
      %v554 = vadd.f32 %v440, %v516
      %v555 = vadd.f32 %v441, %v517
      %v556 = vadd.f32 %v442, %v518
      %v557 = vadd.f32 %v443, %v519
      %v558 = vadd.f32 %v444, %v520
      %v559 = vadd.f32 %v445, %v521
      %v560 = vadd.f32 %v446, %v522
      %v561 = vadd.f32 %v447, %v523
      %v562 = vadd.f32 %v448, %v524
      %v563 = vadd.f32 %v449, %v525
      %v564 = vadd.f32 %v450, %v526
      %v565 = vadd.f32 %v451, %v527
      %v566 = vadd.f32 %v452, %v528
      %v567 = vadd.f32 %v453, %v529
      %v568 = vadd.f32 %v454, %v530
      %v569 = vld [vmem:[#allocation2 + $0x3] sm:$0xff]
      %v570 = vld [vmem:[#allocation2 + $0xb] sm:$0xff]
      %v571 = vld [vmem:[#allocation2 + $0x1b] sm:$0xff]
      %v572 = vld [vmem:[#allocation2 + $0x23] sm:$0xff]
      %v573 = vld [vmem:[#allocation2 + $0x33] sm:$0xff]
      %v574 = vld [vmem:[#allocation2 + $0x3b] sm:$0xff]
      %v575 = vld [vmem:[#allocation2 + $0x4b] sm:$0xff]
      %v576 = vld [vmem:[#allocation2 + $0x53] sm:$0xff]
      %v577 = vld [vmem:[#allocation2 + $0x63] sm:$0xff]
      %v578 = vld [vmem:[#allocation2 + $0x6b] sm:$0xff]
      %v579 = vld [vmem:[#allocation2 + $0x7b] sm:$0xff]
      %v580 = vld [vmem:[#allocation2 + $0x83] sm:$0xff]
      %v581 = vld [vmem:[#allocation2 + $0x93] sm:$0xff]
      %v582 = vld [vmem:[#allocation2 + $0x9b] sm:$0xff]
      %v583 = vld [vmem:[#allocation2 + $0xab] sm:$0xff]
      %v584 = vld [vmem:[#allocation2 + $0xb3] sm:$0xff]
      %v585 = vld [vmem:[#allocation2 + $0xc3] sm:$0xff]
      %v586 = vld [vmem:[#allocation2 + $0xcb] sm:$0xff]
      %v587 = vld [vmem:[#allocation2 + $0xdb] sm:$0xff]
      %v588 = vld [vmem:[#allocation2 + $0xe3] sm:$0xff]
      %v589 = vld [vmem:[#allocation2 + $0xf3] sm:$0xff]
      %v590 = vld [vmem:[#allocation2 + $0xfb] sm:$0xff]
      %v591 = vld [vmem:[#allocation2 + $0x10b] sm:$0xff]
      %v592 = vld [vmem:[#allocation2 + $0x113] sm:$0xff]
      %v593 = vld [vmem:[#allocation2 + $0x123] sm:$0xff]
      %v594 = vld [vmem:[#allocation2 + $0x12b] sm:$0xff]
      %v595 = vld [vmem:[#allocation2 + $0x13b] sm:$0xff]
      %v596 = vld [vmem:[#allocation2 + $0x143] sm:$0xff]
      %v597 = vld [vmem:[#allocation2 + $0x153] sm:$0xff]
      %v598 = vld [vmem:[#allocation2 + $0x15b] sm:$0xff]
      %v599 = vld [vmem:[#allocation2 + $0x16b] sm:$0xff]
      %v600 = vld [vmem:[#allocation2 + $0x173] sm:$0xff]
      %v601 = vld [vmem:[#allocation2 + $0x183] sm:$0xff]
      %v602 = vld [vmem:[#allocation2 + $0x18b] sm:$0xff]
      %v603 = vld [vmem:[#allocation2 + $0x19b] sm:$0xff]
      %v604 = vld [vmem:[#allocation2 + $0x1a3] sm:$0xff]
      %v605 = vld [vmem:[#allocation2 + $0x1b3] sm:$0xff]
      %v606 = vld [vmem:[#allocation2 + $0x1bb] sm:$0xff]
      %v607 = vmul.f32 %v569, 0.125
      %v608 = vmul.f32 %v570, 0.125
      %v609 = vmul.f32 %v571, 0.125
      %v610 = vmul.f32 %v572, 0.125
      %v611 = vmul.f32 %v573, 0.125
      %v612 = vmul.f32 %v574, 0.125
      %v613 = vmul.f32 %v575, 0.125
      %v614 = vmul.f32 %v576, 0.125
      %v615 = vmul.f32 %v577, 0.125
      %v616 = vmul.f32 %v578, 0.125
      %v617 = vmul.f32 %v579, 0.125
      %v618 = vmul.f32 %v580, 0.125
      %v619 = vmul.f32 %v581, 0.125
      %v620 = vmul.f32 %v582, 0.125
      %v621 = vmul.f32 %v583, 0.125
      %v622 = vmul.f32 %v584, 0.125
      %v623 = vmul.f32 %v585, 0.125
      %v624 = vmul.f32 %v586, 0.125
      %v625 = vmul.f32 %v587, 0.125
      %v626 = vmul.f32 %v588, 0.125
      %v627 = vmul.f32 %v589, 0.125
      %v628 = vmul.f32 %v590, 0.125
      %v629 = vmul.f32 %v591, 0.125
      %v630 = vmul.f32 %v592, 0.125
      %v631 = vmul.f32 %v593, 0.125
      %v632 = vmul.f32 %v594, 0.125
      %v633 = vmul.f32 %v595, 0.125
      %v634 = vmul.f32 %v596, 0.125
      %v635 = vmul.f32 %v597, 0.125
      %v636 = vmul.f32 %v598, 0.125
      %v637 = vmul.f32 %v599, 0.125
      %v638 = vmul.f32 %v600, 0.125
      %v639 = vmul.f32 %v601, 0.125
      %v640 = vmul.f32 %v602, 0.125
      %v641 = vmul.f32 %v603, 0.125
      %v642 = vmul.f32 %v604, 0.125
      %v643 = vmul.f32 %v605, 0.125
      %v644 = vmul.f32 %v606, 0.125
      %v645 = vadd.f32 %v531, %v607
      %v646 = vadd.f32 %v532, %v608
      %v647 = vadd.f32 %v533, %v609
      %v648 = vadd.f32 %v534, %v610
      %v649 = vadd.f32 %v535, %v611
      %v650 = vadd.f32 %v536, %v612
      %v651 = vadd.f32 %v537, %v613
      %v652 = vadd.f32 %v538, %v614
      %v653 = vadd.f32 %v539, %v615
      %v654 = vadd.f32 %v540, %v616
      %v655 = vadd.f32 %v541, %v617
      %v656 = vadd.f32 %v542, %v618
      %v657 = vadd.f32 %v543, %v619
      %v658 = vadd.f32 %v544, %v620
      %v659 = vadd.f32 %v545, %v621
      %v660 = vadd.f32 %v546, %v622
      %v661 = vadd.f32 %v547, %v623
      %v662 = vadd.f32 %v548, %v624
      %v663 = vadd.f32 %v549, %v625
      %v664 = vadd.f32 %v550, %v626
      %v665 = vadd.f32 %v551, %v627
      %v666 = vadd.f32 %v552, %v628
      %v667 = vadd.f32 %v553, %v629
      %v668 = vadd.f32 %v554, %v630
      %v669 = vadd.f32 %v555, %v631
      %v670 = vadd.f32 %v556, %v632
      %v671 = vadd.f32 %v557, %v633
      %v672 = vadd.f32 %v558, %v634
      %v673 = vadd.f32 %v559, %v635
      %v674 = vadd.f32 %v560, %v636
      %v675 = vadd.f32 %v561, %v637
      %v676 = vadd.f32 %v562, %v638
      %v677 = vadd.f32 %v563, %v639
      %v678 = vadd.f32 %v564, %v640
      %v679 = vadd.f32 %v565, %v641
      %v680 = vadd.f32 %v566, %v642
      %v681 = vadd.f32 %v567, %v643
      %v682 = vadd.f32 %v568, %v644
      %683 = vst.msk [vmem:[#allocation3] sm:$0xff] %vm148, %v645
      %684 = vst.msk [vmem:[#allocation3 + $0x8] sm:$0xff] %vm148, %v646
      %685 = vst.msk [vmem:[#allocation3 + $0x10] sm:$0xff] %vm148, %v647
      %686 = vst.msk [vmem:[#allocation3 + $0x18] sm:$0xff] %vm148, %v648
      %687 = vst.msk [vmem:[#allocation3 + $0x20] sm:$0xff] %vm148, %v649
      %688 = vst.msk [vmem:[#allocation3 + $0x28] sm:$0xff] %vm148, %v650
      %689 = vst.msk [vmem:[#allocation3 + $0x30] sm:$0xff] %vm148, %v651
      %690 = vst.msk [vmem:[#allocation3 + $0x38] sm:$0xff] %vm148, %v652
      %691 = vst.msk [vmem:[#allocation3 + $0x40] sm:$0xff] %vm148, %v653
      %692 = vst.msk [vmem:[#allocation3 + $0x48] sm:$0xff] %vm148, %v654
      %693 = vst.msk [vmem:[#allocation3 + $0x50] sm:$0xff] %vm148, %v655
      %694 = vst.msk [vmem:[#allocation3 + $0x58] sm:$0xff] %vm148, %v656
      %695 = vst.msk [vmem:[#allocation3 + $0x60] sm:$0xff] %vm148, %v657
      %696 = vst.msk [vmem:[#allocation3 + $0x68] sm:$0xff] %vm148, %v658
      %697 = vst.msk [vmem:[#allocation3 + $0x70] sm:$0xff] %vm148, %v659
      %698 = vst.msk [vmem:[#allocation3 + $0x78] sm:$0xff] %vm148, %v660
      %699 = vst.msk [vmem:[#allocation3 + $0x80] sm:$0xff] %vm148, %v661
      %700 = vst.msk [vmem:[#allocation3 + $0x88] sm:$0xff] %vm148, %v662
      %701 = vst.msk [vmem:[#allocation3 + $0x90] sm:$0xff] %vm148, %v663
      %702 = vst.msk [vmem:[#allocation3 + $0x98] sm:$0xff] %vm148, %v664
      %703 = vst.msk [vmem:[#allocation3 + $0xa0] sm:$0xff] %vm148, %v665
      %704 = vst.msk [vmem:[#allocation3 + $0xa8] sm:$0xff] %vm148, %v666
      %705 = vst.msk [vmem:[#allocation3 + $0xb0] sm:$0xff] %vm148, %v667
      %706 = vst.msk [vmem:[#allocation3 + $0xb8] sm:$0xff] %vm148, %v668
      %707 = vst.msk [vmem:[#allocation3 + $0xc0] sm:$0xff] %vm148, %v669
      %708 = vst.msk [vmem:[#allocation3 + $0xc8] sm:$0xff] %vm148, %v670
      %709 = vst.msk [vmem:[#allocation3 + $0xd0] sm:$0xff] %vm148, %v671
      %710 = vst.msk [vmem:[#allocation3 + $0xd8] sm:$0xff] %vm148, %v672
      %711 = vst.msk [vmem:[#allocation3 + $0xe0] sm:$0xff] %vm148, %v673
      %712 = vst.msk [vmem:[#allocation3 + $0xe8] sm:$0xff] %vm148, %v674
      %713 = vst.msk [vmem:[#allocation3 + $0xf0] sm:$0xff] %vm148, %v675
      %714 = vst.msk [vmem:[#allocation3 + $0xf8] sm:$0xff] %vm148, %v676
      %715 = vst.msk [vmem:[#allocation3 + $0x100] sm:$0xff] %vm148, %v677
      %716 = vst.msk [vmem:[#allocation3 + $0x108] sm:$0xff] %vm148, %v678
      %717 = vst.msk [vmem:[#allocation3 + $0x110] sm:$0xff] %vm148, %v679
      %718 = vst.msk [vmem:[#allocation3 + $0x118] sm:$0xff] %vm148, %v680
      %719 = vst.msk [vmem:[#allocation3 + $0x120] sm:$0xff] %vm148, %v681
      %720 = vst.msk [vmem:[#allocation3 + $0x128] sm:$0xff] %vm148, %v682
      %v721 = vld [vmem:[#allocation3] sm:$0xff]
      %v722 = vld [vmem:[#allocation3 + $0x8] sm:$0xff]
      %v723 = vld [vmem:[#allocation3 + $0x10] sm:$0xff]
      %v724 = vld [vmem:[#allocation3 + $0x18] sm:$0xff]
      %v725 = vld [vmem:[#allocation3 + $0x20] sm:$0xff]
      %v726 = vld [vmem:[#allocation3 + $0x28] sm:$0xff]
      %v727 = vld [vmem:[#allocation3 + $0x30] sm:$0xff]
      %v728 = vld [vmem:[#allocation3 + $0x38] sm:$0xff]
      %v729 = vld [vmem:[#allocation3 + $0x40] sm:$0xff]
      %v730 = vld [vmem:[#allocation3 + $0x48] sm:$0xff]
      %v731 = vld [vmem:[#allocation3 + $0x50] sm:$0xff]
      %v732 = vld [vmem:[#allocation3 + $0x58] sm:$0xff]
      %v733 = vld [vmem:[#allocation3 + $0x60] sm:$0xff]
      %v734 = vld [vmem:[#allocation3 + $0x68] sm:$0xff]
      %v735 = vld [vmem:[#allocation3 + $0x70] sm:$0xff]
      %v736 = vld [vmem:[#allocation3 + $0x78] sm:$0xff]
      %v737 = vld [vmem:[#allocation3 + $0x80] sm:$0xff]
      %v738 = vld [vmem:[#allocation3 + $0x88] sm:$0xff]
      %v739 = vld [vmem:[#allocation3 + $0x90] sm:$0xff]
      %v740 = vld [vmem:[#allocation3 + $0x98] sm:$0xff]
      %v741 = vld [vmem:[#allocation3 + $0xa0] sm:$0xff]
      %v742 = vld [vmem:[#allocation3 + $0xa8] sm:$0xff]
      %v743 = vld [vmem:[#allocation3 + $0xb0] sm:$0xff]
      %v744 = vld [vmem:[#allocation3 + $0xb8] sm:$0xff]
      %v745 = vld [vmem:[#allocation3 + $0xc0] sm:$0xff]
      %v746 = vld [vmem:[#allocation3 + $0xc8] sm:$0xff]
      %v747 = vld [vmem:[#allocation3 + $0xd0] sm:$0xff]
      %v748 = vld [vmem:[#allocation3 + $0xd8] sm:$0xff]
      %v749 = vld [vmem:[#allocation3 + $0xe0] sm:$0xff]
      %v750 = vld [vmem:[#allocation3 + $0xe8] sm:$0xff]
      %v751 = vld [vmem:[#allocation3 + $0xf0] sm:$0xff]
      %v752 = vld [vmem:[#allocation3 + $0xf8] sm:$0xff]
      %v753 = vmul.f32 %v721, 0.125
      %v754 = vmul.f32 %v722, 0.125
      %v755 = vmul.f32 %v723, 0.125
      %v756 = vmul.f32 %v724, 0.125
      %v757 = vmul.f32 %v725, 0.125
      %v758 = vmul.f32 %v726, 0.125
      %v759 = vmul.f32 %v727, 0.125
      %v760 = vmul.f32 %v728, 0.125
      %v761 = vmul.f32 %v729, 0.125
      %v762 = vmul.f32 %v730, 0.125
      %v763 = vmul.f32 %v731, 0.125
      %v764 = vmul.f32 %v732, 0.125
      %v765 = vmul.f32 %v733, 0.125
      %v766 = vmul.f32 %v734, 0.125
      %v767 = vmul.f32 %v735, 0.125
      %v768 = vmul.f32 %v736, 0.125
      %v769 = vmul.f32 %v737, 0.125
      %v770 = vmul.f32 %v738, 0.125
      %v771 = vmul.f32 %v739, 0.125
      %v772 = vmul.f32 %v740, 0.125
      %v773 = vmul.f32 %v741, 0.125
      %v774 = vmul.f32 %v742, 0.125
      %v775 = vmul.f32 %v743, 0.125
      %v776 = vmul.f32 %v744, 0.125
      %v777 = vmul.f32 %v745, 0.125
      %v778 = vmul.f32 %v746, 0.125
      %v779 = vmul.f32 %v747, 0.125
      %v780 = vmul.f32 %v748, 0.125
      %v781 = vmul.f32 %v749, 0.125
      %v782 = vmul.f32 %v750, 0.125
      %v783 = vmul.f32 %v751, 0.125
      %v784 = vmul.f32 %v752, 0.125
      %s785 = scalar_lea.vmem [#allocation3], 16
      %v786 = vld [vmem:[%s785] sm:$0xff]
      %v787 = vld [vmem:[%s785 + $0x8] sm:$0xff]
      %v788 = vld [vmem:[%s785 + $0x10] sm:$0xff]
      %v789 = vld [vmem:[%s785 + $0x18] sm:$0xff]
      %v790 = vld [vmem:[%s785 + $0x20] sm:$0xff]
      %v791 = vld [vmem:[%s785 + $0x28] sm:$0xff]
      %v792 = vld [vmem:[%s785 + $0x30] sm:$0xff]
      %v793 = vld [vmem:[%s785 + $0x38] sm:$0xff]
      %v794 = vld [vmem:[%s785 + $0x40] sm:$0xff]
      %v795 = vld [vmem:[%s785 + $0x48] sm:$0xff]
      %v796 = vld [vmem:[%s785 + $0x50] sm:$0xff]
      %v797 = vld [vmem:[%s785 + $0x58] sm:$0xff]
      %v798 = vld [vmem:[%s785 + $0x60] sm:$0xff]
      %v799 = vld [vmem:[%s785 + $0x68] sm:$0xff]
      %v800 = vld [vmem:[%s785 + $0x70] sm:$0xff]
      %v801 = vld [vmem:[%s785 + $0x78] sm:$0xff]
      %v802 = vld [vmem:[%s785 + $0x80] sm:$0xff]
      %v803 = vld [vmem:[%s785 + $0x88] sm:$0xff]
      %v804 = vld [vmem:[%s785 + $0x90] sm:$0xff]
      %v805 = vld [vmem:[%s785 + $0x98] sm:$0xff]
      %v806 = vld [vmem:[%s785 + $0xa0] sm:$0xff]
      %v807 = vld [vmem:[%s785 + $0xa8] sm:$0xff]
      %v808 = vld [vmem:[%s785 + $0xb0] sm:$0xff]
      %v809 = vld [vmem:[%s785 + $0xb8] sm:$0xff]
      %v810 = vld [vmem:[%s785 + $0xc0] sm:$0xff]
      %v811 = vld [vmem:[%s785 + $0xc8] sm:$0xff]
      %v812 = vld [vmem:[%s785 + $0xd0] sm:$0xff]
      %v813 = vld [vmem:[%s785 + $0xd8] sm:$0xff]
      %v814 = vld [vmem:[%s785 + $0xe0] sm:$0xff]
      %v815 = vld [vmem:[%s785 + $0xe8] sm:$0xff]
      %v816 = vld [vmem:[%s785 + $0xf0] sm:$0xff]
      %v817 = vld [vmem:[%s785 + $0xf8] sm:$0xff]
      %v818 = vmul.f32 %v786, 0.375
      %v819 = vmul.f32 %v787, 0.375
      %v820 = vmul.f32 %v788, 0.375
      %v821 = vmul.f32 %v789, 0.375
      %v822 = vmul.f32 %v790, 0.375
      %v823 = vmul.f32 %v791, 0.375
      %v824 = vmul.f32 %v792, 0.375
      %v825 = vmul.f32 %v793, 0.375
      %v826 = vmul.f32 %v794, 0.375
      %v827 = vmul.f32 %v795, 0.375
      %v828 = vmul.f32 %v796, 0.375
      %v829 = vmul.f32 %v797, 0.375
      %v830 = vmul.f32 %v798, 0.375
      %v831 = vmul.f32 %v799, 0.375
      %v832 = vmul.f32 %v800, 0.375
      %v833 = vmul.f32 %v801, 0.375
      %v834 = vmul.f32 %v802, 0.375
      %v835 = vmul.f32 %v803, 0.375
      %v836 = vmul.f32 %v804, 0.375
      %v837 = vmul.f32 %v805, 0.375
      %v838 = vmul.f32 %v806, 0.375
      %v839 = vmul.f32 %v807, 0.375
      %v840 = vmul.f32 %v808, 0.375
      %v841 = vmul.f32 %v809, 0.375
      %v842 = vmul.f32 %v810, 0.375
      %v843 = vmul.f32 %v811, 0.375
      %v844 = vmul.f32 %v812, 0.375
      %v845 = vmul.f32 %v813, 0.375
      %v846 = vmul.f32 %v814, 0.375
      %v847 = vmul.f32 %v815, 0.375
      %v848 = vmul.f32 %v816, 0.375
      %v849 = vmul.f32 %v817, 0.375
      %v850 = vadd.f32 %v753, %v818
      %v851 = vadd.f32 %v754, %v819
      %v852 = vadd.f32 %v755, %v820
      %v853 = vadd.f32 %v756, %v821
      %v854 = vadd.f32 %v757, %v822
      %v855 = vadd.f32 %v758, %v823
      %v856 = vadd.f32 %v759, %v824
      %v857 = vadd.f32 %v760, %v825
      %v858 = vadd.f32 %v761, %v826
      %v859 = vadd.f32 %v762, %v827
      %v860 = vadd.f32 %v763, %v828
      %v861 = vadd.f32 %v764, %v829
      %v862 = vadd.f32 %v765, %v830
      %v863 = vadd.f32 %v766, %v831
      %v864 = vadd.f32 %v767, %v832
      %v865 = vadd.f32 %v768, %v833
      %v866 = vadd.f32 %v769, %v834
      %v867 = vadd.f32 %v770, %v835
      %v868 = vadd.f32 %v771, %v836
      %v869 = vadd.f32 %v772, %v837
      %v870 = vadd.f32 %v773, %v838
      %v871 = vadd.f32 %v774, %v839
      %v872 = vadd.f32 %v775, %v840
      %v873 = vadd.f32 %v776, %v841
      %v874 = vadd.f32 %v777, %v842
      %v875 = vadd.f32 %v778, %v843
      %v876 = vadd.f32 %v779, %v844
      %v877 = vadd.f32 %v780, %v845
      %v878 = vadd.f32 %v781, %v846
      %v879 = vadd.f32 %v782, %v847
      %v880 = vadd.f32 %v783, %v848
      %v881 = vadd.f32 %v784, %v849
      %s882 = scalar_lea.vmem [#allocation3], 32
      %v883 = vld [vmem:[%s882] sm:$0xff]
      %v884 = vld [vmem:[%s882 + $0x8] sm:$0xff]
      %v885 = vld [vmem:[%s882 + $0x10] sm:$0xff]
      %v886 = vld [vmem:[%s882 + $0x18] sm:$0xff]
      %v887 = vld [vmem:[%s882 + $0x20] sm:$0xff]
      %v888 = vld [vmem:[%s882 + $0x28] sm:$0xff]
      %v889 = vld [vmem:[%s882 + $0x30] sm:$0xff]
      %v890 = vld [vmem:[%s882 + $0x38] sm:$0xff]
      %v891 = vld [vmem:[%s882 + $0x40] sm:$0xff]
      %v892 = vld [vmem:[%s882 + $0x48] sm:$0xff]
      %v893 = vld [vmem:[%s882 + $0x50] sm:$0xff]
      %v894 = vld [vmem:[%s882 + $0x58] sm:$0xff]
      %v895 = vld [vmem:[%s882 + $0x60] sm:$0xff]
      %v896 = vld [vmem:[%s882 + $0x68] sm:$0xff]
      %v897 = vld [vmem:[%s882 + $0x70] sm:$0xff]
      %v898 = vld [vmem:[%s882 + $0x78] sm:$0xff]
      %v899 = vld [vmem:[%s882 + $0x80] sm:$0xff]
      %v900 = vld [vmem:[%s882 + $0x88] sm:$0xff]
      %v901 = vld [vmem:[%s882 + $0x90] sm:$0xff]
      %v902 = vld [vmem:[%s882 + $0x98] sm:$0xff]
      %v903 = vld [vmem:[%s882 + $0xa0] sm:$0xff]
      %v904 = vld [vmem:[%s882 + $0xa8] sm:$0xff]
      %v905 = vld [vmem:[%s882 + $0xb0] sm:$0xff]
      %v906 = vld [vmem:[%s882 + $0xb8] sm:$0xff]
      %v907 = vld [vmem:[%s882 + $0xc0] sm:$0xff]
      %v908 = vld [vmem:[%s882 + $0xc8] sm:$0xff]
      %v909 = vld [vmem:[%s882 + $0xd0] sm:$0xff]
      %v910 = vld [vmem:[%s882 + $0xd8] sm:$0xff]
      %v911 = vld [vmem:[%s882 + $0xe0] sm:$0xff]
      %v912 = vld [vmem:[%s882 + $0xe8] sm:$0xff]
      %v913 = vld [vmem:[%s882 + $0xf0] sm:$0xff]
      %v914 = vld [vmem:[%s882 + $0xf8] sm:$0xff]
      %v915 = vmul.f32 %v883, 0.375
      %v916 = vmul.f32 %v884, 0.375
      %v917 = vmul.f32 %v885, 0.375
      %v918 = vmul.f32 %v886, 0.375
      %v919 = vmul.f32 %v887, 0.375
      %v920 = vmul.f32 %v888, 0.375
      %v921 = vmul.f32 %v889, 0.375
      %v922 = vmul.f32 %v890, 0.375
      %v923 = vmul.f32 %v891, 0.375
      %v924 = vmul.f32 %v892, 0.375
      %v925 = vmul.f32 %v893, 0.375
      %v926 = vmul.f32 %v894, 0.375
      %v927 = vmul.f32 %v895, 0.375
      %v928 = vmul.f32 %v896, 0.375
      %v929 = vmul.f32 %v897, 0.375
      %v930 = vmul.f32 %v898, 0.375
      %v931 = vmul.f32 %v899, 0.375
      %v932 = vmul.f32 %v900, 0.375
      %v933 = vmul.f32 %v901, 0.375
      %v934 = vmul.f32 %v902, 0.375
      %v935 = vmul.f32 %v903, 0.375
      %v936 = vmul.f32 %v904, 0.375
      %v937 = vmul.f32 %v905, 0.375
      %v938 = vmul.f32 %v906, 0.375
      %v939 = vmul.f32 %v907, 0.375
      %v940 = vmul.f32 %v908, 0.375
      %v941 = vmul.f32 %v909, 0.375
      %v942 = vmul.f32 %v910, 0.375
      %v943 = vmul.f32 %v911, 0.375
      %v944 = vmul.f32 %v912, 0.375
      %v945 = vmul.f32 %v913, 0.375
      %v946 = vmul.f32 %v914, 0.375
      %v947 = vadd.f32 %v850, %v915
      %v948 = vadd.f32 %v851, %v916
      %v949 = vadd.f32 %v852, %v917
      %v950 = vadd.f32 %v853, %v918
      %v951 = vadd.f32 %v854, %v919
      %v952 = vadd.f32 %v855, %v920
      %v953 = vadd.f32 %v856, %v921
      %v954 = vadd.f32 %v857, %v922
      %v955 = vadd.f32 %v858, %v923
      %v956 = vadd.f32 %v859, %v924
      %v957 = vadd.f32 %v860, %v925
      %v958 = vadd.f32 %v861, %v926
      %v959 = vadd.f32 %v862, %v927
      %v960 = vadd.f32 %v863, %v928
      %v961 = vadd.f32 %v864, %v929
      %v962 = vadd.f32 %v865, %v930
      %v963 = vadd.f32 %v866, %v931
      %v964 = vadd.f32 %v867, %v932
      %v965 = vadd.f32 %v868, %v933
      %v966 = vadd.f32 %v869, %v934
      %v967 = vadd.f32 %v870, %v935
      %v968 = vadd.f32 %v871, %v936
      %v969 = vadd.f32 %v872, %v937
      %v970 = vadd.f32 %v873, %v938
      %v971 = vadd.f32 %v874, %v939
      %v972 = vadd.f32 %v875, %v940
      %v973 = vadd.f32 %v876, %v941
      %v974 = vadd.f32 %v877, %v942
      %v975 = vadd.f32 %v878, %v943
      %v976 = vadd.f32 %v879, %v944
      %v977 = vadd.f32 %v880, %v945
      %v978 = vadd.f32 %v881, %v946
      %s979 = scalar_lea.vmem [#allocation3], 48
      %v980 = vld [vmem:[%s979] sm:$0xff]
      %v981 = vld [vmem:[%s979 + $0x8] sm:$0xff]
      %v982 = vld [vmem:[%s979 + $0x10] sm:$0xff]
      %v983 = vld [vmem:[%s979 + $0x18] sm:$0xff]
      %v984 = vld [vmem:[%s979 + $0x20] sm:$0xff]
      %v985 = vld [vmem:[%s979 + $0x28] sm:$0xff]
      %v986 = vld [vmem:[%s979 + $0x30] sm:$0xff]
      %v987 = vld [vmem:[%s979 + $0x38] sm:$0xff]
      %v988 = vld [vmem:[%s979 + $0x40] sm:$0xff]
      %v989 = vld [vmem:[%s979 + $0x48] sm:$0xff]
      %v990 = vld [vmem:[%s979 + $0x50] sm:$0xff]
      %v991 = vld [vmem:[%s979 + $0x58] sm:$0xff]
      %v992 = vld [vmem:[%s979 + $0x60] sm:$0xff]
      %v993 = vld [vmem:[%s979 + $0x68] sm:$0xff]
      %v994 = vld [vmem:[%s979 + $0x70] sm:$0xff]
      %v995 = vld [vmem:[%s979 + $0x78] sm:$0xff]
      %v996 = vld [vmem:[%s979 + $0x80] sm:$0xff]
      %v997 = vld [vmem:[%s979 + $0x88] sm:$0xff]
      %v998 = vld [vmem:[%s979 + $0x90] sm:$0xff]
      %v999 = vld [vmem:[%s979 + $0x98] sm:$0xff]
      %v1000 = vld [vmem:[%s979 + $0xa0] sm:$0xff]
      %v1001 = vld [vmem:[%s979 + $0xa8] sm:$0xff]
      %v1002 = vld [vmem:[%s979 + $0xb0] sm:$0xff]
      %v1003 = vld [vmem:[%s979 + $0xb8] sm:$0xff]
      %v1004 = vld [vmem:[%s979 + $0xc0] sm:$0xff]
      %v1005 = vld [vmem:[%s979 + $0xc8] sm:$0xff]
      %v1006 = vld [vmem:[%s979 + $0xd0] sm:$0xff]
      %v1007 = vld [vmem:[%s979 + $0xd8] sm:$0xff]
      %v1008 = vld [vmem:[%s979 + $0xe0] sm:$0xff]
      %v1009 = vld [vmem:[%s979 + $0xe8] sm:$0xff]
      %v1010 = vld [vmem:[%s979 + $0xf0] sm:$0xff]
      %v1011 = vld [vmem:[%s979 + $0xf8] sm:$0xff]
      %v1012 = vmul.f32 %v980, 0.125
      %v1013 = vmul.f32 %v981, 0.125
      %v1014 = vmul.f32 %v982, 0.125
      %v1015 = vmul.f32 %v983, 0.125
      %v1016 = vmul.f32 %v984, 0.125
      %v1017 = vmul.f32 %v985, 0.125
      %v1018 = vmul.f32 %v986, 0.125
      %v1019 = vmul.f32 %v987, 0.125
      %v1020 = vmul.f32 %v988, 0.125
      %v1021 = vmul.f32 %v989, 0.125
      %v1022 = vmul.f32 %v990, 0.125
      %v1023 = vmul.f32 %v991, 0.125
      %v1024 = vmul.f32 %v992, 0.125
      %v1025 = vmul.f32 %v993, 0.125
      %v1026 = vmul.f32 %v994, 0.125
      %v1027 = vmul.f32 %v995, 0.125
      %v1028 = vmul.f32 %v996, 0.125
      %v1029 = vmul.f32 %v997, 0.125
      %v1030 = vmul.f32 %v998, 0.125
      %v1031 = vmul.f32 %v999, 0.125
      %v1032 = vmul.f32 %v1000, 0.125
      %v1033 = vmul.f32 %v1001, 0.125
      %v1034 = vmul.f32 %v1002, 0.125
      %v1035 = vmul.f32 %v1003, 0.125
      %v1036 = vmul.f32 %v1004, 0.125
      %v1037 = vmul.f32 %v1005, 0.125
      %v1038 = vmul.f32 %v1006, 0.125
      %v1039 = vmul.f32 %v1007, 0.125
      %v1040 = vmul.f32 %v1008, 0.125
      %v1041 = vmul.f32 %v1009, 0.125
      %v1042 = vmul.f32 %v1010, 0.125
      %v1043 = vmul.f32 %v1011, 0.125
      %v1044 = vadd.f32 %v947, %v1012
      %v1045 = vadd.f32 %v948, %v1013
      %v1046 = vadd.f32 %v949, %v1014
      %v1047 = vadd.f32 %v950, %v1015
      %v1048 = vadd.f32 %v951, %v1016
      %v1049 = vadd.f32 %v952, %v1017
      %v1050 = vadd.f32 %v953, %v1018
      %v1051 = vadd.f32 %v954, %v1019
      %v1052 = vadd.f32 %v955, %v1020
      %v1053 = vadd.f32 %v956, %v1021
      %v1054 = vadd.f32 %v957, %v1022
      %v1055 = vadd.f32 %v958, %v1023
      %v1056 = vadd.f32 %v959, %v1024
      %v1057 = vadd.f32 %v960, %v1025
      %v1058 = vadd.f32 %v961, %v1026
      %v1059 = vadd.f32 %v962, %v1027
      %v1060 = vadd.f32 %v963, %v1028
      %v1061 = vadd.f32 %v964, %v1029
      %v1062 = vadd.f32 %v965, %v1030
      %v1063 = vadd.f32 %v966, %v1031
      %v1064 = vadd.f32 %v967, %v1032
      %v1065 = vadd.f32 %v968, %v1033
      %v1066 = vadd.f32 %v969, %v1034
      %v1067 = vadd.f32 %v970, %v1035
      %v1068 = vadd.f32 %v971, %v1036
      %v1069 = vadd.f32 %v972, %v1037
      %v1070 = vadd.f32 %v973, %v1038
      %v1071 = vadd.f32 %v974, %v1039
      %v1072 = vadd.f32 %v975, %v1040
      %v1073 = vadd.f32 %v976, %v1041
      %v1074 = vadd.f32 %v977, %v1042
      %v1075 = vadd.f32 %v978, %v1043
      %1076 = vst.msk [vmem:[%s147] sm:$0xff] %vm148, %v1044
      %1077 = vst.msk [vmem:[%s147 + $0x8] sm:$0xff] %vm148, %v1045
      %1078 = vst.msk [vmem:[%s147 + $0x10] sm:$0xff] %vm148, %v1046
      %1079 = vst.msk [vmem:[%s147 + $0x18] sm:$0xff] %vm148, %v1047
      %1080 = vst.msk [vmem:[%s147 + $0x20] sm:$0xff] %vm148, %v1048
      %1081 = vst.msk [vmem:[%s147 + $0x28] sm:$0xff] %vm148, %v1049
      %1082 = vst.msk [vmem:[%s147 + $0x30] sm:$0xff] %vm148, %v1050
      %1083 = vst.msk [vmem:[%s147 + $0x38] sm:$0xff] %vm148, %v1051
      %1084 = vst.msk [vmem:[%s147 + $0x40] sm:$0xff] %vm148, %v1052
      %1085 = vst.msk [vmem:[%s147 + $0x48] sm:$0xff] %vm148, %v1053
      %1086 = vst.msk [vmem:[%s147 + $0x50] sm:$0xff] %vm148, %v1054
      %1087 = vst.msk [vmem:[%s147 + $0x58] sm:$0xff] %vm148, %v1055
      %1088 = vst.msk [vmem:[%s147 + $0x60] sm:$0xff] %vm148, %v1056
      %1089 = vst.msk [vmem:[%s147 + $0x68] sm:$0xff] %vm148, %v1057
      %1090 = vst.msk [vmem:[%s147 + $0x70] sm:$0xff] %vm148, %v1058
      %1091 = vst.msk [vmem:[%s147 + $0x78] sm:$0xff] %vm148, %v1059
      %1092 = vst.msk [vmem:[%s147 + $0x80] sm:$0xff] %vm148, %v1060
      %1093 = vst.msk [vmem:[%s147 + $0x88] sm:$0xff] %vm148, %v1061
      %1094 = vst.msk [vmem:[%s147 + $0x90] sm:$0xff] %vm148, %v1062
      %1095 = vst.msk [vmem:[%s147 + $0x98] sm:$0xff] %vm148, %v1063
      %1096 = vst.msk [vmem:[%s147 + $0xa0] sm:$0xff] %vm148, %v1064
      %1097 = vst.msk [vmem:[%s147 + $0xa8] sm:$0xff] %vm148, %v1065
      %1098 = vst.msk [vmem:[%s147 + $0xb0] sm:$0xff] %vm148, %v1066
      %1099 = vst.msk [vmem:[%s147 + $0xb8] sm:$0xff] %vm148, %v1067
      %1100 = vst.msk [vmem:[%s147 + $0xc0] sm:$0xff] %vm148, %v1068
      %1101 = vst.msk [vmem:[%s147 + $0xc8] sm:$0xff] %vm148, %v1069
      %1102 = vst.msk [vmem:[%s147 + $0xd0] sm:$0xff] %vm148, %v1070
      %1103 = vst.msk [vmem:[%s147 + $0xd8] sm:$0xff] %vm148, %v1071
      %1104 = vst.msk [vmem:[%s147 + $0xe0] sm:$0xff] %vm148, %v1072
      %1105 = vst.msk [vmem:[%s147 + $0xe8] sm:$0xff] %vm148, %v1073
      %1106 = vst.msk [vmem:[%s147 + $0xf0] sm:$0xff] %vm148, %v1074
      %1107 = vst.msk [vmem:[%s147 + $0xf8] sm:$0xff] %vm148, %v1075
      %p1108 = scmp.lt.s32.totalorder %s16, 1
      %s1109 = scalar_select %p1108, %s16, 1
      %p1110 = scmp.lt.s32.totalorder %s17, 0
      %s1111 = scalar_select %p1110, %s17, 0
      %s1112 = smul.addr %s1109, 32
      %s1113 = sadd.s32 %s1111, %s1112
      %s1114 = smul.addr %s1113, 8
      %s1115 = scalar_lea.vmem %s1, %s1114
      // Predicated region
      $region25: #{tpu_custom_call.1} parent=23 // pred_check
        %p1116 = pneg %p72
      $region26: #{tpu_custom_call.1} parent=23 // pred_check_branch
        %1118 = sbr.rel (%p1116) target = $region28
      $region27: #{tpu_custom_call.1} parent=23 // pred_region
        _
      $region28: #{tpu_custom_call.1} parent=23 // pred_fallthru
        _
    $region24: #{tpu_custom_call.1} parent=5 // pred_fallthru
      _
    %p1119 = scmp.le.s32.totalorder 2, %s7
    // Predicated region
    $region29: #{tpu_custom_call.1} parent=5 // pred_check
      %p1120 = pneg %p1119
    $region30: #{tpu_custom_call.1} parent=5 // pred_check_branch
      %1122 = sbr.rel (%p1120) target = $region32
    $region31: #{tpu_custom_call.1} parent=5 // pred_region
      %s1123 = ssub.s32 %s7, 2
      // Predicated region
      $region33: #{tpu_custom_call.1} parent=31 // pred_check
        %p1124 = pneg %p78
      $region34: #{tpu_custom_call.1} parent=31 // pred_check_branch
        %1126 = sbr.rel (%p1124) target = $region36
      $region35: #{tpu_custom_call.1} parent=31 // pred_region
        %p1127 = scmp.lt.s32.totalorder %s18, 1
        %s1128 = scalar_select %p1127, %s18, 1
        %p1129 = scmp.lt.s32.totalorder %s19, 0
        %s1130 = scalar_select %p1129, %s19, 0
        %s1131 = smul.addr %s1128, 32
        %s1132 = sadd.s32 %s1130, %s1131
        %s1133 = smul.addr %s1132, 8
        %s1134 = scalar_lea.vmem %s1, %s1133
      $region36: #{tpu_custom_call.1} parent=31 // pred_fallthru
        _
    $region32: #{tpu_custom_call.1} parent=5 // pred_fallthru
      _
  $region6: #{tpu_custom_call.1} parent=0 // loop_footer
    %s11 = sadd.s32 1, %s7
  $region7: #{tpu_custom_call.1} parent=0 // loop_footer_branch
    %6 = sbr.rel target = $region3
  $region8: #{tpu_custom_call.1} parent=0 // loop_exit
    _

</llo_original>
